<compile_context>
chip_gen: v7x
topology: tpu7x:2x2x1
jax: 0.10.0
libtpu: 0.0.40
codegen_flags: <defaults>
</compile_context>

<pallas_src>
import math

import jax
import jax.numpy as jnp
from jax import lax
from jax.experimental import pallas as pl
from jax.experimental.pallas import tpu as pltpu


# ----------------------------- config (small, deterministic) -----------------
BATCH = 2
SEQLEN = 8
DIM = 32
N_HEAD = 4
N_KV_HEAD = 2
HEAD_DIM = DIM // N_HEAD                                # 8
KV_SIZE = N_KV_HEAD * HEAD_DIM                          # 16
QK_SIZE = DIM + KV_SIZE                                 # 48
TOTAL_KV_DIM = (N_HEAD + 2 * N_KV_HEAD) * HEAD_DIM      # 64
W_BIG_COLS = TOTAL_KV_DIM + QK_SIZE                     # 112 (qkv + swapped q,k)
REP = N_HEAD // N_KV_HEAD                               # 2
SCALE = 1.0 / math.sqrt(HEAD_DIM)


# ----------------------------- fused Pallas kernel ----------------------------
def _fused_attn_kernel(x_ref, wbig_ref, wo_ref, cos_ref, sin_ref, o_ref):
    """Single-invocation fused attention.

    x_ref:    (B*S, DIM)            activations (row = b*S + s)
    wbig_ref: (DIM, W_BIG_COLS)     [Wqkv^T | pair-swapped Wq^T | pair-swapped Wk^T]
    wo_ref:   (DIM, DIM)            Wo^T
    cos_ref:  (B*S, QK_SIZE)        cos table tiled over q heads + kv heads
    sin_ref:  (B*S, QK_SIZE)        sign-alternating sin table, same tiling
    o_ref:    (B*S, DIM)            output
    """
    x = x_ref[...]                                                     # (BS, DIM)

    # One wide MXU matmul produces q, k, v AND the pair-swapped q, k.
    y = jnp.dot(x, wbig_ref[...], preferred_element_type=jnp.float32)  # (BS, 112)
    qk = y[:, :QK_SIZE]                                                # [q | k]
    v = y[:, QK_SIZE:TOTAL_KV_DIM]                                     # (BS, KV_SIZE)
    qk_sw = y[:, TOTAL_KV_DIM:]                                        # swapped [q | k]

    # RoPE on q and k at once (lane-dense VPU fma, no per-head ops, no MXU perm).
    qk = qk * cos_ref[...] + qk_sw * sin_ref[...]
    q = qk[:, :DIM] * SCALE            # fold the 1/sqrt(Dh) scale into q once
    k = qk[:, DIM:]

    # Causal additive bias, computed once and shared by every (batch, head).
    row = lax.broadcasted_iota(jnp.int32, (SEQLEN, SEQLEN), 0)
    col = lax.broadcasted_iota(jnp.int32, (SEQLEN, SEQLEN), 1)
    causal_bias = jnp.where(col <= row, 0.0, -1e30).astype(jnp.float32)

    # All (batch, head) pairs handled inside this single kernel body
    # (no grid steps, no per-step DMA/overhead).  GQA: head h -> kv head h//REP.
    batch_out = []
    for b in range(BATCH):
        r0 = b * SEQLEN
        head_out = []
        for h in range(N_HEAD):
            g = h // REP
            qh = q[r0:r0 + SEQLEN, h * HEAD_DIM:(h + 1) * HEAD_DIM]    # (S, Dh)
            kh = k[r0:r0 + SEQLEN, g * HEAD_DIM:(g + 1) * HEAD_DIM]    # (S, Dh)
            vh = v[r0:r0 + SEQLEN, g * HEAD_DIM:(g + 1) * HEAD_DIM]    # (S, Dh)

            scores = jnp.dot(qh, kh.T, preferred_element_type=jnp.float32)
            scores = scores + causal_bias                              # (S, S)
            m = jnp.max(scores, axis=-1, keepdims=True)
            p = jnp.exp(scores - m)
            denom = jnp.sum(p, axis=-1, keepdims=True)
            o = jnp.dot(p, vh, preferred_element_type=jnp.float32)
            o = o * pl.reciprocal(denom, approx=True)                  # (S, Dh)
            head_out.append(o)
        batch_out.append(jnp.concatenate(head_out, axis=-1))           # (S, DIM)
    attn = jnp.concatenate(batch_out, axis=0)                          # (BS, DIM)

    # Output projection; single lane-dense store of (B*S, DIM).
    o_ref[...] = jnp.dot(attn, wo_ref[...],
                         preferred_element_type=jnp.float32).astype(o_ref.dtype)


# ----------------------------- wrappers ---------------------------------------
def prepare_weights(wqkv, wo):
    """One-time (outside jitted forward) weight prep: transpose + build the
    pair-swapped q/k weight columns so RoPE's swap needs no in-kernel shuffle."""
    wqkv_t = wqkv.T                                          # (DIM, TOTAL_KV_DIM)
    q_sw_cols = jnp.arange(DIM) ^ 1                          # swap adjacent pairs
    k_sw_cols = DIM + (jnp.arange(KV_SIZE) ^ 1)
    w_big_t = jnp.concatenate(
        [wqkv_t, wqkv_t[:, q_sw_cols], wqkv_t[:, k_sw_cols]], axis=1)  # (DIM, 112)
    return w_big_t, wo.T


@jax.jit
def attention_forward(x, w_big_t, wo_t, freqs_cis):
    """x: (B, S, DIM) f32.  w_big_t: (DIM, 112).  wo_t: (DIM, DIM).
    freqs_cis: (S, HEAD_DIM//2, 2) = stack([cos, sin], -1)."""
    B, S, dim = x.shape

    # RoPE tables, tiled so they apply directly to the lane-dense [q | k] block.
    cos_h = freqs_cis[..., 0]                                # (S, Dh//2)
    sin_h = freqs_cis[..., 1]
    cos_d = jnp.repeat(cos_h, 2, axis=-1)                    # (S, Dh)
    sign = jnp.tile(jnp.array([-1.0, 1.0], jnp.float32), HEAD_DIM // 2)
    sin_d = jnp.repeat(sin_h, 2, axis=-1) * sign             # (S, Dh)
    n_copies = N_HEAD + N_KV_HEAD                            # q heads + kv heads
    cos_qk = jnp.tile(jnp.tile(cos_d, (1, n_copies)), (B, 1))   # (B*S, QK_SIZE)
    sin_qk = jnp.tile(jnp.tile(sin_d, (1, n_copies)), (B, 1))   # (B*S, QK_SIZE)

    x2 = x.reshape(B * S, dim)                               # row = b*S + s

    out2 = pl.pallas_call(
        _fused_attn_kernel,
        out_shape=jax.ShapeDtypeStruct((B * S, dim), jnp.float32),
    )(x2, w_big_t, wo_t, cos_qk, sin_qk)
    # attn_dropout / resid_dropout are identity in eval mode.
    return out2.reshape(B, S, dim)


# ----------------------------- pure-JAX reference ----------------------------
def _rope_ref(t, freqs_cis):
    # t: (B, S, H, Dh); freqs_cis: (S, Dh//2, 2)
    B, S, H, Dh = t.shape
    ts = t.reshape(B, S, H, Dh // 2, 2)
    fc = freqs_cis.reshape(1, S, 1, Dh // 2, 2)
    out = jnp.stack([ts[..., 0] * fc[..., 0] - ts[..., 1] * fc[..., 1],
                     ts[..., 1] * fc[..., 0] + ts[..., 0] * fc[..., 1]], axis=-1)
    return out.reshape(B, S, H, Dh)


def attention_ref(x, wqkv, wo, freqs_cis):
    B, S, dim = x.shape
    qkv = x @ wqkv.T
    xq = qkv[:, :, :dim].reshape(B, S, N_HEAD, HEAD_DIM)
    xk = qkv[:, :, dim:dim + KV_SIZE].reshape(B, S, N_KV_HEAD, HEAD_DIM)
    xv = qkv[:, :, dim + KV_SIZE:].reshape(B, S, N_KV_HEAD, HEAD_DIM)
    xq = _rope_ref(xq, freqs_cis)
    xk = _rope_ref(xk, freqs_cis)
    q = jnp.transpose(xq, (0, 2, 1, 3))
    k = jnp.repeat(jnp.transpose(xk, (0, 2, 1, 3)), REP, axis=1)
    v = jnp.repeat(jnp.transpose(xv, (0, 2, 1, 3)), REP, axis=1)
    s = jnp.einsum('bhqd,bhkd->bhqk', q, k) / math.sqrt(HEAD_DIM)
    mask = jnp.tril(jnp.ones((S, S), bool))
    s = jnp.where(mask, s, -jnp.inf)
    p = jax.nn.softmax(s, axis=-1)
    o = jnp.einsum('bhqk,bhkd->bhqd', p, v)
    o = jnp.transpose(o, (0, 2, 1, 3)).reshape(B, S, dim)
    return o @ wo.T


# ----------------------------- main -------------------------------------------
if __name__ == "__main__":
    key = jax.random.PRNGKey(0)
    kx, kq, ko = jax.random.split(key, 3)

    x = jax.random.normal(kx, (BATCH, SEQLEN, DIM), jnp.float32)
    wqkv = jax.random.normal(kq, (TOTAL_KV_DIM, DIM), jnp.float32) * 0.02
    wo = jax.random.normal(ko, (DIM, DIM), jnp.float32) * 0.02

    # Standard RoPE freqs_cis: (S, HEAD_DIM//2, 2) = stack([cos, sin], -1)
    inv_freq = 1.0 / (10000.0 ** (jnp.arange(0, HEAD_DIM, 2, dtype=jnp.float32) / HEAD_DIM))
    t = jnp.arange(SEQLEN, dtype=jnp.float32)
    angles = jnp.outer(t, inv_freq)                               # (S, Dh//2)
    freqs_cis = jnp.stack([jnp.cos(angles), jnp.sin(angles)], axis=-1)

    # One-time weight prep (outside the jitted forward).
    w_big_t, wo_t = prepare_weights(wqkv, wo)
    w_big_t = jax.block_until_ready(w_big_t)
    wo_t = jax.block_until_ready(wo_t)

    out = attention_forward(x, w_big_t, wo_t, freqs_cis)
    out = jax.block_until_ready(out)

    ref = attention_ref(x, wqkv, wo, freqs_cis)
    assert out.shape == (BATCH, SEQLEN, DIM)
    assert jnp.allclose(out, ref, rtol=1e-3, atol=1e-4), float(jnp.max(jnp.abs(out - ref)))

    print("KERNEL_OK")
</pallas_src>

<mosaic_0001>
module attributes {stable_mosaic.version = 11 : i64} {
  func.func @_fused_attn_kernel(%arg0: memref<16x32xf32, #tpu.memory_space<vmem>>, %arg1: memref<32x112xf32, #tpu.memory_space<vmem>>, %arg2: memref<32x32xf32, #tpu.memory_space<vmem>>, %arg3: memref<16x48xf32, #tpu.memory_space<vmem>>, %arg4: memref<16x48xf32, #tpu.memory_space<vmem>>, %arg5: memref<16x32xf32, #tpu.memory_space<vmem>>) attributes {dimension_semantics = [], scalar_prefetch = 0 : i64, scratch_operands = 0 : i64, tpu.core_type = #tpu.core_type<tc>} {
    %c0 = arith.constant 0 : index
    %c0_0 = arith.constant 0 : index
    %0 = vector.load %arg0[%c0, %c0_0] : memref<16x32xf32, #tpu.memory_space<vmem>>, vector<16x32xf32>
    %c0_1 = arith.constant 0 : index
    %c0_2 = arith.constant 0 : index
    %1 = vector.load %arg1[%c0_1, %c0_2] : memref<32x112xf32, #tpu.memory_space<vmem>>, vector<32x112xf32>
    %cst = arith.constant dense<0.000000e+00> : vector<16x112xf32>
    %2 = tpu.matmul %0, %1, %cst {dimension_numbers = #tpu.dot_dimension_numbers<[1], [0], [0], [1], [0, 0, 1, 1], [], []>} : vector<16x32xf32>, vector<32x112xf32>, vector<16x112xf32> -> vector<16x112xf32>
    %3 = vector.extract_strided_slice %2 {offsets = [0, 0], sizes = [16, 48], strides = [1, 1]} : vector<16x112xf32> to vector<16x48xf32>
    %4 = vector.extract_strided_slice %2 {offsets = [0, 48], sizes = [16, 16], strides = [1, 1]} : vector<16x112xf32> to vector<16x16xf32>
    %5 = vector.extract_strided_slice %2 {offsets = [0, 64], sizes = [16, 48], strides = [1, 1]} : vector<16x112xf32> to vector<16x48xf32>
    %c0_3 = arith.constant 0 : index
    %c0_4 = arith.constant 0 : index
    %6 = vector.load %arg3[%c0_3, %c0_4] : memref<16x48xf32, #tpu.memory_space<vmem>>, vector<16x48xf32>
    %7 = arith.mulf %3, %6 : vector<16x48xf32>
    %c0_5 = arith.constant 0 : index
    %c0_6 = arith.constant 0 : index
    %8 = vector.load %arg4[%c0_5, %c0_6] : memref<16x48xf32, #tpu.memory_space<vmem>>, vector<16x48xf32>
    %9 = arith.mulf %5, %8 : vector<16x48xf32>
    %10 = arith.addf %7, %9 : vector<16x48xf32>
    %11 = vector.extract_strided_slice %10 {offsets = [0, 0], sizes = [16, 32], strides = [1, 1]} : vector<16x48xf32> to vector<16x32xf32>
    %cst_7 = arith.constant 0.353553385 : f32
    %12 = vector.broadcast %cst_7 : f32 to vector<16x32xf32>
    %13 = arith.mulf %11, %12 : vector<16x32xf32>
    %14 = vector.extract_strided_slice %10 {offsets = [0, 32], sizes = [16, 16], strides = [1, 1]} : vector<16x48xf32> to vector<16x16xf32>
    %15 = tpu.iota {dimensions = array<i32: 0>} : vector<8x8xi32>
    %16 = tpu.iota {dimensions = array<i32: 1>} : vector<8x8xi32>
    %17 = arith.cmpi sle, %16, %15 : vector<8x8xi32>
    %cst_8 = arith.constant 0.000000e+00 : f32
    %cst_9 = arith.constant -1.000000e+30 : f32
    %18 = vector.broadcast %cst_8 : f32 to vector<8x8xf32>
    %19 = vector.broadcast %cst_9 : f32 to vector<8x8xf32>
    %20 = arith.select %17, %18, %19 : vector<8x8xi1>, vector<8x8xf32>
    %21 = vector.extract_strided_slice %13 {offsets = [0, 0], sizes = [8, 8], strides = [1, 1]} : vector<16x32xf32> to vector<8x8xf32>
    %22 = vector.extract_strided_slice %14 {offsets = [0, 0], sizes = [8, 8], strides = [1, 1]} : vector<16x16xf32> to vector<8x8xf32>
    %23 = vector.extract_strided_slice %4 {offsets = [0, 0], sizes = [8, 8], strides = [1, 1]} : vector<16x16xf32> to vector<8x8xf32>
    %24 = tpu.transpose %22, [1, 0] : vector<8x8xf32> -> vector<8x8xf32>
    %cst_10 = arith.constant dense<0.000000e+00> : vector<8x8xf32>
    %25 = tpu.matmul %21, %24, %cst_10 {dimension_numbers = #tpu.dot_dimension_numbers<[1], [0], [0], [1], [0, 0, 1, 1], [], []>} : vector<8x8xf32>, vector<8x8xf32>, vector<8x8xf32> -> vector<8x8xf32>
    %26 = arith.addf %25, %20 : vector<8x8xf32>
    %cst_11 = arith.constant dense<0xFF800000> : vector<8xf32>
    %27 = vector.multi_reduction <maximumf>, %26, %cst_11 [1] : vector<8x8xf32> to vector<8xf32>
    %28 = vector.shape_cast %27 : vector<8xf32> to vector<8x1xf32>
    %29 = vector.broadcast %28 : vector<8x1xf32> to vector<8x8xf32>
    %30 = arith.subf %26, %29 : vector<8x8xf32>
    %31 = math.exp %30 : vector<8x8xf32>
    %cst_12 = arith.constant dense<0.000000e+00> : vector<8xf32>
    %32 = vector.multi_reduction <add>, %31, %cst_12 [1] : vector<8x8xf32> to vector<8xf32>
    %33 = vector.shape_cast %32 : vector<8xf32> to vector<8x1xf32>
    %cst_13 = arith.constant dense<0.000000e+00> : vector<8x8xf32>
    %34 = tpu.matmul %31, %23, %cst_13 {dimension_numbers = #tpu.dot_dimension_numbers<[1], [0], [0], [1], [0, 0, 1, 1], [], []>} : vector<8x8xf32>, vector<8x8xf32>, vector<8x8xf32> -> vector<8x8xf32>
    %35 = tpu.reciprocal %33 {approx = true} : vector<8x1xf32> -> vector<8x1xf32>
    %36 = vector.broadcast %35 : vector<8x1xf32> to vector<8x8xf32>
    %37 = arith.mulf %34, %36 : vector<8x8xf32>
    %38 = vector.extract_strided_slice %13 {offsets = [0, 8], sizes = [8, 8], strides = [1, 1]} : vector<16x32xf32> to vector<8x8xf32>
    %39 = vector.extract_strided_slice %14 {offsets = [0, 0], sizes = [8, 8], strides = [1, 1]} : vector<16x16xf32> to vector<8x8xf32>
    %40 = vector.extract_strided_slice %4 {offsets = [0, 0], sizes = [8, 8], strides = [1, 1]} : vector<16x16xf32> to vector<8x8xf32>
    %41 = tpu.transpose %39, [1, 0] : vector<8x8xf32> -> vector<8x8xf32>
    %cst_14 = arith.constant dense<0.000000e+00> : vector<8x8xf32>
    %42 = tpu.matmul %38, %41, %cst_14 {dimension_numbers = #tpu.dot_dimension_numbers<[1], [0], [0], [1], [0, 0, 1, 1], [], []>} : vector<8x8xf32>, vector<8x8xf32>, vector<8x8xf32> -> vector<8x8xf32>
    %43 = arith.addf %42, %20 : vector<8x8xf32>
    %cst_15 = arith.constant dense<0xFF800000> : vector<8xf32>
    %44 = vector.multi_reduction <maximumf>, %43, %cst_15 [1] : vector<8x8xf32> to vector<8xf32>
    %45 = vector.shape_cast %44 : vector<8xf32> to vector<8x1xf32>
    %46 = vector.broadcast %45 : vector<8x1xf32> to vector<8x8xf32>
    %47 = arith.subf %43, %46 : vector<8x8xf32>
    %48 = math.exp %47 : vector<8x8xf32>
    %cst_16 = arith.constant dense<0.000000e+00> : vector<8xf32>
    %49 = vector.multi_reduction <add>, %48, %cst_16 [1] : vector<8x8xf32> to vector<8xf32>
    %50 = vector.shape_cast %49 : vector<8xf32> to vector<8x1xf32>
    %cst_17 = arith.constant dense<0.000000e+00> : vector<8x8xf32>
    %51 = tpu.matmul %48, %40, %cst_17 {dimension_numbers = #tpu.dot_dimension_numbers<[1], [0], [0], [1], [0, 0, 1, 1], [], []>} : vector<8x8xf32>, vector<8x8xf32>, vector<8x8xf32> -> vector<8x8xf32>
    %52 = tpu.reciprocal %50 {approx = true} : vector<8x1xf32> -> vector<8x1xf32>
    %53 = vector.broadcast %52 : vector<8x1xf32> to vector<8x8xf32>
    %54 = arith.mulf %51, %53 : vector<8x8xf32>
    %55 = vector.extract_strided_slice %13 {offsets = [0, 16], sizes = [8, 8], strides = [1, 1]} : vector<16x32xf32> to vector<8x8xf32>
    %56 = vector.extract_strided_slice %14 {offsets = [0, 8], sizes = [8, 8], strides = [1, 1]} : vector<16x16xf32> to vector<8x8xf32>
    %57 = vector.extract_strided_slice %4 {offsets = [0, 8], sizes = [8, 8], strides = [1, 1]} : vector<16x16xf32> to vector<8x8xf32>
    %58 = tpu.transpose %56, [1, 0] : vector<8x8xf32> -> vector<8x8xf32>
    %cst_18 = arith.constant dense<0.000000e+00> : vector<8x8xf32>
    %59 = tpu.matmul %55, %58, %cst_18 {dimension_numbers = #tpu.dot_dimension_numbers<[1], [0], [0], [1], [0, 0, 1, 1], [], []>} : vector<8x8xf32>, vector<8x8xf32>, vector<8x8xf32> -> vector<8x8xf32>
    %60 = arith.addf %59, %20 : vector<8x8xf32>
    %cst_19 = arith.constant dense<0xFF800000> : vector<8xf32>
    %61 = vector.multi_reduction <maximumf>, %60, %cst_19 [1] : vector<8x8xf32> to vector<8xf32>
    %62 = vector.shape_cast %61 : vector<8xf32> to vector<8x1xf32>
    %63 = vector.broadcast %62 : vector<8x1xf32> to vector<8x8xf32>
    %64 = arith.subf %60, %63 : vector<8x8xf32>
    %65 = math.exp %64 : vector<8x8xf32>
    %cst_20 = arith.constant dense<0.000000e+00> : vector<8xf32>
    %66 = vector.multi_reduction <add>, %65, %cst_20 [1] : vector<8x8xf32> to vector<8xf32>
    %67 = vector.shape_cast %66 : vector<8xf32> to vector<8x1xf32>
    %cst_21 = arith.constant dense<0.000000e+00> : vector<8x8xf32>
    %68 = tpu.matmul %65, %57, %cst_21 {dimension_numbers = #tpu.dot_dimension_numbers<[1], [0], [0], [1], [0, 0, 1, 1], [], []>} : vector<8x8xf32>, vector<8x8xf32>, vector<8x8xf32> -> vector<8x8xf32>
    %69 = tpu.reciprocal %67 {approx = true} : vector<8x1xf32> -> vector<8x1xf32>
    %70 = vector.broadcast %69 : vector<8x1xf32> to vector<8x8xf32>
    %71 = arith.mulf %68, %70 : vector<8x8xf32>
    %72 = vector.extract_strided_slice %13 {offsets = [0, 24], sizes = [8, 8], strides = [1, 1]} : vector<16x32xf32> to vector<8x8xf32>
    %73 = vector.extract_strided_slice %14 {offsets = [0, 8], sizes = [8, 8], strides = [1, 1]} : vector<16x16xf32> to vector<8x8xf32>
    %74 = vector.extract_strided_slice %4 {offsets = [0, 8], sizes = [8, 8], strides = [1, 1]} : vector<16x16xf32> to vector<8x8xf32>
    %75 = tpu.transpose %73, [1, 0] : vector<8x8xf32> -> vector<8x8xf32>
    %cst_22 = arith.constant dense<0.000000e+00> : vector<8x8xf32>
    %76 = tpu.matmul %72, %75, %cst_22 {dimension_numbers = #tpu.dot_dimension_numbers<[1], [0], [0], [1], [0, 0, 1, 1], [], []>} : vector<8x8xf32>, vector<8x8xf32>, vector<8x8xf32> -> vector<8x8xf32>
    %77 = arith.addf %76, %20 : vector<8x8xf32>
    %cst_23 = arith.constant dense<0xFF800000> : vector<8xf32>
    %78 = vector.multi_reduction <maximumf>, %77, %cst_23 [1] : vector<8x8xf32> to vector<8xf32>
    %79 = vector.shape_cast %78 : vector<8xf32> to vector<8x1xf32>
    %80 = vector.broadcast %79 : vector<8x1xf32> to vector<8x8xf32>
    %81 = arith.subf %77, %80 : vector<8x8xf32>
    %82 = math.exp %81 : vector<8x8xf32>
    %cst_24 = arith.constant dense<0.000000e+00> : vector<8xf32>
    %83 = vector.multi_reduction <add>, %82, %cst_24 [1] : vector<8x8xf32> to vector<8xf32>
    %84 = vector.shape_cast %83 : vector<8xf32> to vector<8x1xf32>
    %cst_25 = arith.constant dense<0.000000e+00> : vector<8x8xf32>
    %85 = tpu.matmul %82, %74, %cst_25 {dimension_numbers = #tpu.dot_dimension_numbers<[1], [0], [0], [1], [0, 0, 1, 1], [], []>} : vector<8x8xf32>, vector<8x8xf32>, vector<8x8xf32> -> vector<8x8xf32>
    %86 = tpu.reciprocal %84 {approx = true} : vector<8x1xf32> -> vector<8x1xf32>
    %87 = vector.broadcast %86 : vector<8x1xf32> to vector<8x8xf32>
    %88 = arith.mulf %85, %87 : vector<8x8xf32>
    %89 = tpu.concatenate %37, %54, %71, %88 in 1 : vector<8x8xf32>, vector<8x8xf32>, vector<8x8xf32>, vector<8x8xf32> -> vector<8x32xf32>
    %90 = vector.extract_strided_slice %13 {offsets = [8, 0], sizes = [8, 8], strides = [1, 1]} : vector<16x32xf32> to vector<8x8xf32>
    %91 = vector.extract_strided_slice %14 {offsets = [8, 0], sizes = [8, 8], strides = [1, 1]} : vector<16x16xf32> to vector<8x8xf32>
    %92 = vector.extract_strided_slice %4 {offsets = [8, 0], sizes = [8, 8], strides = [1, 1]} : vector<16x16xf32> to vector<8x8xf32>
    %93 = tpu.transpose %91, [1, 0] : vector<8x8xf32> -> vector<8x8xf32>
    %cst_26 = arith.constant dense<0.000000e+00> : vector<8x8xf32>
    %94 = tpu.matmul %90, %93, %cst_26 {dimension_numbers = #tpu.dot_dimension_numbers<[1], [0], [0], [1], [0, 0, 1, 1], [], []>} : vector<8x8xf32>, vector<8x8xf32>, vector<8x8xf32> -> vector<8x8xf32>
    %95 = arith.addf %94, %20 : vector<8x8xf32>
    %cst_27 = arith.constant dense<0xFF800000> : vector<8xf32>
    %96 = vector.multi_reduction <maximumf>, %95, %cst_27 [1] : vector<8x8xf32> to vector<8xf32>
    %97 = vector.shape_cast %96 : vector<8xf32> to vector<8x1xf32>
    %98 = vector.broadcast %97 : vector<8x1xf32> to vector<8x8xf32>
    %99 = arith.subf %95, %98 : vector<8x8xf32>
    %100 = math.exp %99 : vector<8x8xf32>
    %cst_28 = arith.constant dense<0.000000e+00> : vector<8xf32>
    %101 = vector.multi_reduction <add>, %100, %cst_28 [1] : vector<8x8xf32> to vector<8xf32>
    %102 = vector.shape_cast %101 : vector<8xf32> to vector<8x1xf32>
    %cst_29 = arith.constant dense<0.000000e+00> : vector<8x8xf32>
    %103 = tpu.matmul %100, %92, %cst_29 {dimension_numbers = #tpu.dot_dimension_numbers<[1], [0], [0], [1], [0, 0, 1, 1], [], []>} : vector<8x8xf32>, vector<8x8xf32>, vector<8x8xf32> -> vector<8x8xf32>
    %104 = tpu.reciprocal %102 {approx = true} : vector<8x1xf32> -> vector<8x1xf32>
    %105 = vector.broadcast %104 : vector<8x1xf32> to vector<8x8xf32>
    %106 = arith.mulf %103, %105 : vector<8x8xf32>
    %107 = vector.extract_strided_slice %13 {offsets = [8, 8], sizes = [8, 8], strides = [1, 1]} : vector<16x32xf32> to vector<8x8xf32>
    %108 = vector.extract_strided_slice %14 {offsets = [8, 0], sizes = [8, 8], strides = [1, 1]} : vector<16x16xf32> to vector<8x8xf32>
    %109 = vector.extract_strided_slice %4 {offsets = [8, 0], sizes = [8, 8], strides = [1, 1]} : vector<16x16xf32> to vector<8x8xf32>
    %110 = tpu.transpose %108, [1, 0] : vector<8x8xf32> -> vector<8x8xf32>
    %cst_30 = arith.constant dense<0.000000e+00> : vector<8x8xf32>
    %111 = tpu.matmul %107, %110, %cst_30 {dimension_numbers = #tpu.dot_dimension_numbers<[1], [0], [0], [1], [0, 0, 1, 1], [], []>} : vector<8x8xf32>, vector<8x8xf32>, vector<8x8xf32> -> vector<8x8xf32>
    %112 = arith.addf %111, %20 : vector<8x8xf32>
    %cst_31 = arith.constant dense<0xFF800000> : vector<8xf32>
    %113 = vector.multi_reduction <maximumf>, %112, %cst_31 [1] : vector<8x8xf32> to vector<8xf32>
    %114 = vector.shape_cast %113 : vector<8xf32> to vector<8x1xf32>
    %115 = vector.broadcast %114 : vector<8x1xf32> to vector<8x8xf32>
    %116 = arith.subf %112, %115 : vector<8x8xf32>
    %117 = math.exp %116 : vector<8x8xf32>
    %cst_32 = arith.constant dense<0.000000e+00> : vector<8xf32>
    %118 = vector.multi_reduction <add>, %117, %cst_32 [1] : vector<8x8xf32> to vector<8xf32>
    %119 = vector.shape_cast %118 : vector<8xf32> to vector<8x1xf32>
    %cst_33 = arith.constant dense<0.000000e+00> : vector<8x8xf32>
    %120 = tpu.matmul %117, %109, %cst_33 {dimension_numbers = #tpu.dot_dimension_numbers<[1], [0], [0], [1], [0, 0, 1, 1], [], []>} : vector<8x8xf32>, vector<8x8xf32>, vector<8x8xf32> -> vector<8x8xf32>
    %121 = tpu.reciprocal %119 {approx = true} : vector<8x1xf32> -> vector<8x1xf32>
    %122 = vector.broadcast %121 : vector<8x1xf32> to vector<8x8xf32>
    %123 = arith.mulf %120, %122 : vector<8x8xf32>
    %124 = vector.extract_strided_slice %13 {offsets = [8, 16], sizes = [8, 8], strides = [1, 1]} : vector<16x32xf32> to vector<8x8xf32>
    %125 = vector.extract_strided_slice %14 {offsets = [8, 8], sizes = [8, 8], strides = [1, 1]} : vector<16x16xf32> to vector<8x8xf32>
    %126 = vector.extract_strided_slice %4 {offsets = [8, 8], sizes = [8, 8], strides = [1, 1]} : vector<16x16xf32> to vector<8x8xf32>
    %127 = tpu.transpose %125, [1, 0] : vector<8x8xf32> -> vector<8x8xf32>
    %cst_34 = arith.constant dense<0.000000e+00> : vector<8x8xf32>
    %128 = tpu.matmul %124, %127, %cst_34 {dimension_numbers = #tpu.dot_dimension_numbers<[1], [0], [0], [1], [0, 0, 1, 1], [], []>} : vector<8x8xf32>, vector<8x8xf32>, vector<8x8xf32> -> vector<8x8xf32>
    %129 = arith.addf %128, %20 : vector<8x8xf32>
    %cst_35 = arith.constant dense<0xFF800000> : vector<8xf32>
    %130 = vector.multi_reduction <maximumf>, %129, %cst_35 [1] : vector<8x8xf32> to vector<8xf32>
    %131 = vector.shape_cast %130 : vector<8xf32> to vector<8x1xf32>
    %132 = vector.broadcast %131 : vector<8x1xf32> to vector<8x8xf32>
    %133 = arith.subf %129, %132 : vector<8x8xf32>
    %134 = math.exp %133 : vector<8x8xf32>
    %cst_36 = arith.constant dense<0.000000e+00> : vector<8xf32>
    %135 = vector.multi_reduction <add>, %134, %cst_36 [1] : vector<8x8xf32> to vector<8xf32>
    %136 = vector.shape_cast %135 : vector<8xf32> to vector<8x1xf32>
    %cst_37 = arith.constant dense<0.000000e+00> : vector<8x8xf32>
    %137 = tpu.matmul %134, %126, %cst_37 {dimension_numbers = #tpu.dot_dimension_numbers<[1], [0], [0], [1], [0, 0, 1, 1], [], []>} : vector<8x8xf32>, vector<8x8xf32>, vector<8x8xf32> -> vector<8x8xf32>
    %138 = tpu.reciprocal %136 {approx = true} : vector<8x1xf32> -> vector<8x1xf32>
    %139 = vector.broadcast %138 : vector<8x1xf32> to vector<8x8xf32>
    %140 = arith.mulf %137, %139 : vector<8x8xf32>
    %141 = vector.extract_strided_slice %13 {offsets = [8, 24], sizes = [8, 8], strides = [1, 1]} : vector<16x32xf32> to vector<8x8xf32>
    %142 = vector.extract_strided_slice %14 {offsets = [8, 8], sizes = [8, 8], strides = [1, 1]} : vector<16x16xf32> to vector<8x8xf32>
    %143 = vector.extract_strided_slice %4 {offsets = [8, 8], sizes = [8, 8], strides = [1, 1]} : vector<16x16xf32> to vector<8x8xf32>
    %144 = tpu.transpose %142, [1, 0] : vector<8x8xf32> -> vector<8x8xf32>
    %cst_38 = arith.constant dense<0.000000e+00> : vector<8x8xf32>
    %145 = tpu.matmul %141, %144, %cst_38 {dimension_numbers = #tpu.dot_dimension_numbers<[1], [0], [0], [1], [0, 0, 1, 1], [], []>} : vector<8x8xf32>, vector<8x8xf32>, vector<8x8xf32> -> vector<8x8xf32>
    %146 = arith.addf %145, %20 : vector<8x8xf32>
    %cst_39 = arith.constant dense<0xFF800000> : vector<8xf32>
    %147 = vector.multi_reduction <maximumf>, %146, %cst_39 [1] : vector<8x8xf32> to vector<8xf32>
    %148 = vector.shape_cast %147 : vector<8xf32> to vector<8x1xf32>
    %149 = vector.broadcast %148 : vector<8x1xf32> to vector<8x8xf32>
    %150 = arith.subf %146, %149 : vector<8x8xf32>
    %151 = math.exp %150 : vector<8x8xf32>
    %cst_40 = arith.constant dense<0.000000e+00> : vector<8xf32>
    %152 = vector.multi_reduction <add>, %151, %cst_40 [1] : vector<8x8xf32> to vector<8xf32>
    %153 = vector.shape_cast %152 : vector<8xf32> to vector<8x1xf32>
    %cst_41 = arith.constant dense<0.000000e+00> : vector<8x8xf32>
    %154 = tpu.matmul %151, %143, %cst_41 {dimension_numbers = #tpu.dot_dimension_numbers<[1], [0], [0], [1], [0, 0, 1, 1], [], []>} : vector<8x8xf32>, vector<8x8xf32>, vector<8x8xf32> -> vector<8x8xf32>
    %155 = tpu.reciprocal %153 {approx = true} : vector<8x1xf32> -> vector<8x1xf32>
    %156 = vector.broadcast %155 : vector<8x1xf32> to vector<8x8xf32>
    %157 = arith.mulf %154, %156 : vector<8x8xf32>
    %158 = tpu.concatenate %106, %123, %140, %157 in 1 : vector<8x8xf32>, vector<8x8xf32>, vector<8x8xf32>, vector<8x8xf32> -> vector<8x32xf32>
    %159 = tpu.concatenate %89, %158 in 0 : vector<8x32xf32>, vector<8x32xf32> -> vector<16x32xf32>
    %c0_42 = arith.constant 0 : index
    %c0_43 = arith.constant 0 : index
    %160 = vector.load %arg2[%c0_42, %c0_43] : memref<32x32xf32, #tpu.memory_space<vmem>>, vector<32x32xf32>
    %cst_44 = arith.constant dense<0.000000e+00> : vector<16x32xf32>
    %161 = tpu.matmul %159, %160, %cst_44 {dimension_numbers = #tpu.dot_dimension_numbers<[1], [0], [0], [1], [0, 0, 1, 1], [], []>} : vector<16x32xf32>, vector<32x32xf32>, vector<16x32xf32> -> vector<16x32xf32>
    %c0_45 = arith.constant 0 : index
    %c0_46 = arith.constant 0 : index
    %162 = vector.load %arg5[%c0_45, %c0_46] : memref<16x32xf32, #tpu.memory_space<vmem>>, vector<16x32xf32>
    tpu.vector_store %arg5[%c0_45, %c0_46], %161 {strides = array<i32>} : memref<16x32xf32, #tpu.memory_space<vmem>>, vector<16x32xf32>,
    return
  }
}

</mosaic_0001>

<llo_original>
// kernel: tile.23
$region0: #{tile.23}
  #allocation0 [shape = 's32[1]{0}', space=sflag, size = 0x4, scoped, tag = 'scoped memory for tile.23']
  %s0 = inlined_call_operand.vmem [shape: f32[2], index: 0, kind: input, shape index: {}]
  %s1 = inlined_call_operand.vmem [shape: f32[4,2], index: 1, kind: output, shape index: {}]
  // Predicated region
  $region2: #{tile.23} parent=0 // pred_check
    _
  $region3: #{tile.23} parent=0 // pred_check_branch
    %3 = sbr.rel (0) target = $region5
  $region4: #{tile.23} parent=0 // pred_region
    _
  $region5: #{tile.23} parent=0 // pred_fallthru
    _
  %v4 = vld [vmem:[%s0] ss:$0 sm:$0xff]
  %5 = vst [vmem:[%s1] sm:$0xf] %v4

// kernel: attention_forward.1
$region0: #{attention_forward.1}
  #allocation0 [shape = 'u32[]', space=smem, size = 0x4, offset = 0x4, fixed_abs, tag = 'smem constant byte address 0x4 - core index']
  #allocation1 [shape = 'u32[144,128]{1,0:T(1,128)}', space=vmem, size = 0x12000, scoped, tag = 'internal scratch']
  %s0 = inlined_call_operand.vmem [shape: f32[16,32], index: 0, kind: input, shape index: {}]
  %s1 = inlined_call_operand.vmem [shape: f32[32,112], index: 1, kind: input, shape index: {}]
  %s2 = inlined_call_operand.vmem [shape: f32[32,32], index: 2, kind: input, shape index: {}]
  %s3 = inlined_call_operand.vmem [shape: f32[16,48], index: 3, kind: input, shape index: {}]
  %s4 = inlined_call_operand.vmem [shape: f32[16,48], index: 4, kind: input, shape index: {}]
  %s5 = inlined_call_operand.hbm [shape: f32[16,32], index: 5, kind: output, shape index: {}]
  %s6 = sld [smem:[#allocation0]]
  $region30: #{attention_forward.1} parent=0
    _
  %s8 = ssub.s32 1, %s6
  %s9 = scalar_select 0, %s8, %s6
  $region1: #{attention_forward.1} parent=0
    #allocation2 [shape = 'u8[8192]{0}', space=vmem, size = 0x2000, scoped, tag = 'output window, operand 0, single buffered']
    #allocation3 [shape = 's32[1]{0}', space=sflag, size = 0x4, scoped, tag = 'scoped memory for attention_forward.1']
    %10 = vsyncpa [#allocation3], 0
    // Predicated region
    $region2: #{attention_forward.1} parent=1 // pred_check
      _
    $region3: #{attention_forward.1} parent=1 // pred_check_branch
      %12 = sbr.rel (0) target = $region5
    $region4: #{attention_forward.1} parent=1 // pred_region
      _
    $region5: #{attention_forward.1} parent=1 // pred_fallthru
      _
    // Predicated region
    $region6: #{attention_forward.1} parent=1 // pred_check
      _
    $region7: #{attention_forward.1} parent=1 // pred_check_branch
      %14 = sbr.rel (0) target = $region9
    $region8: #{attention_forward.1} parent=1 // pred_region
      _
    $region9: #{attention_forward.1} parent=1 // pred_fallthru
      _
    // Predicated region
    $region10: #{attention_forward.1} parent=1 // pred_check
      _
    $region11: #{attention_forward.1} parent=1 // pred_check_branch
      %16 = sbr.rel (0) target = $region13
    $region12: #{attention_forward.1} parent=1 // pred_region
      _
    $region13: #{attention_forward.1} parent=1 // pred_fallthru
      _
    // Predicated region
    $region14: #{attention_forward.1} parent=1 // pred_check
      _
    $region15: #{attention_forward.1} parent=1 // pred_check_branch
      %18 = sbr.rel (0) target = $region17
    $region16: #{attention_forward.1} parent=1 // pred_region
      _
    $region17: #{attention_forward.1} parent=1 // pred_fallthru
      _
    // Predicated region
    $region18: #{attention_forward.1} parent=1 // pred_check
      _
    $region19: #{attention_forward.1} parent=1 // pred_check_branch
      %20 = sbr.rel (0) target = $region21
    $region20: #{attention_forward.1} parent=1 // pred_region
      _
    $region21: #{attention_forward.1} parent=1 // pred_fallthru
      _
    %v21 = vld [vmem:[%s0] sm:$0xff]
    %v22 = vld [vmem:[%s0 + $0x8] sm:$0xff]
    %v23 = vld [vmem:[%s1] sm:$0xff]
    %v24 = vld [vmem:[%s1 + $0x8] sm:$0xff]
    %v25 = vld [vmem:[%s1 + $0x10] sm:$0xff]
    %v26 = vld [vmem:[%s1 + $0x18] sm:$0xff]
    %vm27 = vcmask 261120
    %v29 = vsel %vm27, %v21, 0
    %v32 = vsel %vm27, %v22, 0
    %34 = vmatprep.subr.mxu0 0.0
    %35 = vmatpush1.msra.mxu0 %v23
    %36 = vmatprep.subr.mxu0 0.0
    %37 = vmatpush1.msra.mxu0 %v24
    %38 = vmatprep.subr.mxu0 0.0
    %39 = vmatpush1.msra.mxu0 %v25
    %40 = vmatprep.subr.mxu0 0.0
    %41 = vmatpush1.msra.mxu0 %v26
    %42 = vmatprep.subr.mxu0 0.0
    %43 = vmatpush1.msra.mxu0 0.0
    %44 = vmatprep.subr.mxu0 0.0
    %45 = vmatpush1.msra.mxu0 0.0
    %46 = vmatprep.subr.mxu0 0.0
    %47 = vmatpush1.msra.mxu0 0.0
    %48 = vmatprep.subr.mxu0 0.0
    %49 = vmatpush1.msra.mxu0 0.0
    %50 = vmatprep.subr.mxu0 0.0
    %51 = vmatpush1.msra.mxu0 0.0
    %52 = vmatprep.subr.mxu0 0.0
    %53 = vmatpush1.msra.mxu0 0.0
    %54 = vmatprep.subr.mxu0 0.0
    %55 = vmatpush1.msra.mxu0 0.0
    %56 = vmatprep.subr.mxu0 0.0
    %57 = vmatpush1.msra.mxu0 0.0
    %58 = vmatprep.subr.mxu0 0.0
    %59 = vmatpush1.msra.mxu0 0.0
    %60 = vmatprep.subr.mxu0 0.0
    %61 = vmatpush1.msra.mxu0 0.0
    %62 = vmatprep.subr.mxu0 0.0
    %63 = vmatpush1.msra.mxu0 0.0
    %64 = vmatprep.subr.mxu0 0.0
    %65 = vmatpush1.msra.mxu0 0.0
    %66 = vmatprep.subr.mxu0 0.0
    %67 = vmatpush1.msra.mxu0 0.0
    %68 = vmatprep.subr.mxu0 0.0
    %69 = vmatpush1.msra.mxu0 0.0
    %70 = vmatprep.subr.mxu0 0.0
    %71 = vmatpush1.msra.mxu0 0.0
    %72 = vmatprep.subr.mxu0 0.0
    %73 = vmatpush1.msra.mxu0 0.0
    %74 = vmatprep.subr.mxu0 0.0
    %75 = vmatpush1.msra.mxu0 0.0
    %76 = vmatprep.subr.mxu0 0.0
    %77 = vmatpush1.msra.mxu0 0.0
    %78 = vmatprep.subr.mxu0 0.0
    %79 = vmatpush1.msra.mxu0 0.0
    %80 = vmatprep.subr.mxu0 0.0
    %81 = vmatpush1.msra.mxu0 0.0
    %82 = vmatprep.subr.mxu0 0.0
    %83 = vmatpush1.msra.mxu0 0.0
    %84 = vmatprep.subr.mxu0 0.0
    %85 = vmatpush1.msra.mxu0 0.0
    %86 = vmatprep.subr.mxu0 0.0
    %87 = vmatpush1.msra.mxu0 0.0
    %88 = vmatprep.subr.mxu0 0.0
    %89 = vmatpush1.msra.mxu0 0.0
    %90 = vmatprep.subr.mxu0 0.0
    %91 = vmatpush1.msra.mxu0 0.0
    %92 = vmatprep.subr.mxu0 0.0
    %93 = vmatpush1.msra.mxu0 0.0
    %94 = vmatprep.subr.mxu0 0.0
    %95 = vmatpush1.msra.mxu0 0.0
    %96 = vmatprep.subr.mxu0 0.0
    %97 = vmatpush1.msra.mxu0 0.0
    %98 = vmatprep.mubr.f32.mxu0 0.0
    %99 = vmatmul.mubr.f32.gmra.mrb[0].mxu0 %v29
    %v100 = vpop.f32.mrb[0].mxu0
    %v101 = vadd.f32 0.0, %v100
    %v102 = vpop.f32.mrb[0].mxu0
    %103 = vmatprep.mubr.f32.mxu0 0.0
    %104 = vmatmul.mubr.f32.gmra.mrb[0].mxu0 %v32
    %v105 = vpop.f32.mrb[0].mxu0
    %v106 = vadd.f32 0.0, %v105
    %v107 = vpop.f32.mrb[0].mxu0
    %108 = vdwg.mxu0
    %v109 = vld [vmem:[%s3] sm:$0xff]
    %v110 = vld [vmem:[%s3 + $0x8] sm:$0xff]
    %v111 = vmul.f32 %v101, %v109
    %v112 = vmul.f32 %v106, %v110
    %v113 = vld [vmem:[%s4] sm:$0xff]
    %v114 = vld [vmem:[%s4 + $0x8] sm:$0xff]
    %117 = vrot.lane.b32.xlu0 %v113, 64
    %v118 = vpop.permute.xlu0 %117
    %119 = vrot.lane.b32.xlu0 %v114, 64
    %v120 = vpop.permute.xlu0 %119
    %v123 = vmul.f32 %v101, %v118
    %v124 = vmul.f32 %v106, %v120
    %127 = vrot.lane.b32.xlu0 %v123, 64
    %v128 = vpop.permute.xlu0 %127
    %129 = vrot.lane.b32.xlu0 %v124, 64
    %v130 = vpop.permute.xlu0 %129
    %v133 = vadd.f32 %v111, %v128
    %v134 = vadd.f32 %v112, %v130
    %v135 = vmul.f32 %v133, 0.35355338
    %v136 = vmul.f32 %v134, 0.35355338
    %v137 = vlaneseq
    %v138 = vshrl.u32 %v137, 7
    %v139 = vlaneseq
    %v140 = vand.u32 %v139, 127
    %vm141 = vcmp.le.s32.totalorder %v140, %v138
    %v142 = vsel %vm141, 0.0, -1e+30
    %144 = vrot.lane.b32.xlu0 %v133, 96
    %v145 = vpop.permute.xlu0 %144
    %vm146 = vcmask 64512
    %v148 = vsel %vm146, %v135, 0
    %v150 = vsel %vm146, %v145, 0
    %152 = vmatprep.subr.mxu0 0.0
    %153 = vmatpush1.xpose.msra.mxu0 %v150
    %154 = vmatprep.subr.mxu0 0.0
    %155 = vmatpush1.xpose.msra.mxu0 0.0
    %156 = vmatprep.subr.mxu0 0.0
    %157 = vmatpush1.xpose.msra.mxu0 0.0
    %158 = vmatprep.subr.mxu0 0.0
    %159 = vmatpush1.xpose.msra.mxu0 0.0
    %160 = vmatprep.subr.mxu0 0.0
    %161 = vmatpush1.xpose.msra.mxu0 0.0
    %162 = vmatprep.subr.mxu0 0.0
    %163 = vmatpush1.xpose.msra.mxu0 0.0
    %164 = vmatprep.subr.mxu0 0.0
    %165 = vmatpush1.xpose.msra.mxu0 0.0
    %166 = vmatprep.subr.mxu0 0.0
    %167 = vmatpush1.xpose.msra.mxu0 0.0
    %168 = vmatprep.subr.mxu0 0.0
    %169 = vmatpush1.xpose.msra.mxu0 0.0
    %170 = vmatprep.subr.mxu0 0.0
    %171 = vmatpush1.xpose.msra.mxu0 0.0
    %172 = vmatprep.subr.mxu0 0.0
    %173 = vmatpush1.xpose.msra.mxu0 0.0
    %174 = vmatprep.subr.mxu0 0.0
    %175 = vmatpush1.xpose.msra.mxu0 0.0
    %176 = vmatprep.subr.mxu0 0.0
    %177 = vmatpush1.xpose.msra.mxu0 0.0
    %178 = vmatprep.subr.mxu0 0.0
    %179 = vmatpush1.xpose.msra.mxu0 0.0
    %180 = vmatprep.subr.mxu0 0.0
    %181 = vmatpush1.xpose.msra.mxu0 0.0
    %182 = vmatprep.subr.mxu0 0.0
    %183 = vmatpush1.xpose.msra.mxu0 0.0
    %184 = vmatprep.subr.mxu0 0.0
    %185 = vmatpush1.xpose.msra.mxu0 0.0
    %186 = vmatprep.subr.mxu0 0.0
    %187 = vmatpush1.xpose.msra.mxu0 0.0
    %188 = vmatprep.subr.mxu0 0.0
    %189 = vmatpush1.xpose.msra.mxu0 0.0
    %190 = vmatprep.subr.mxu0 0.0
    %191 = vmatpush1.xpose.msra.mxu0 0.0
    %192 = vmatprep.subr.mxu0 0.0
    %193 = vmatpush1.xpose.msra.mxu0 0.0
    %194 = vmatprep.subr.mxu0 0.0
    %195 = vmatpush1.xpose.msra.mxu0 0.0
    %196 = vmatprep.subr.mxu0 0.0
    %197 = vmatpush1.xpose.msra.mxu0 0.0
    %198 = vmatprep.subr.mxu0 0.0
    %199 = vmatpush1.xpose.msra.mxu0 0.0
    %200 = vmatprep.subr.mxu0 0.0
    %201 = vmatpush1.xpose.msra.mxu0 0.0
    %202 = vmatprep.subr.mxu0 0.0
    %203 = vmatpush1.xpose.msra.mxu0 0.0
    %204 = vmatprep.subr.mxu0 0.0
    %205 = vmatpush1.xpose.msra.mxu0 0.0
    %206 = vmatprep.subr.mxu0 0.0
    %207 = vmatpush1.xpose.msra.mxu0 0.0
    %208 = vmatprep.subr.mxu0 0.0
    %209 = vmatpush1.xpose.msra.mxu0 0.0
    %210 = vmatprep.subr.mxu0 0.0
    %211 = vmatpush1.xpose.msra.mxu0 0.0
    %212 = vmatprep.subr.mxu0 0.0
    %213 = vmatpush1.xpose.msra.mxu0 0.0
    %214 = vmatprep.subr.mxu0 0.0
    %215 = vmatpush1.xpose.msra.mxu0 0.0
    %216 = vmatprep.mubr.f32.mxu0 0.0
    %217 = vmatmul.mubr.f32.gmra.mrb[0].mxu0 %v148
    %v218 = vpop.f32.mrb[0].mxu0
    %v219 = vadd.f32 %v142, %v218
    %v220 = vpop.f32.mrb[0].mxu0
    %221 = vdwg.mxu0
    %v222 = vsel %vm146, %v219, -inf
    %223 = vmax.xlane.f32.xlu0 %v222
    %v224 = vpop.xlane.xlu0 %223
    %v225 = vsub.f32 %v219, %v224
    %v226 = vmul.f32 %v225, 1.442695
    %v227 = vpow.pop %v226
    %v228 = vsel %vm146, %v227, 0.0
    %229 = vadd.xlane.f32.xlu0 %v228
    %v230 = vpop.xlane.xlu0 %229
    %232 = vrot.lane.b32.xlu0 %v101, 80
    %v233 = vpop.permute.xlu0 %232
    %v236 = vsel %vm146, %v227, 0
    %238 = vmatprep.subr.mxu0 0.0
    %239 = vmatpush1.msra.mxu0 %v233
    %240 = vmatprep.subr.mxu0 0.0
    %241 = vmatpush1.msra.mxu0 0.0
    %242 = vmatprep.subr.mxu0 0.0
    %243 = vmatpush1.msra.mxu0 0.0
    %244 = vmatprep.subr.mxu0 0.0
    %245 = vmatpush1.msra.mxu0 0.0
    %246 = vmatprep.subr.mxu0 0.0
    %247 = vmatpush1.msra.mxu0 0.0
    %248 = vmatprep.subr.mxu0 0.0
    %249 = vmatpush1.msra.mxu0 0.0
    %250 = vmatprep.subr.mxu0 0.0
    %251 = vmatpush1.msra.mxu0 0.0
    %252 = vmatprep.subr.mxu0 0.0
    %253 = vmatpush1.msra.mxu0 0.0
    %254 = vmatprep.subr.mxu0 0.0
    %255 = vmatpush1.msra.mxu0 0.0
    %256 = vmatprep.subr.mxu0 0.0
    %257 = vmatpush1.msra.mxu0 0.0
    %258 = vmatprep.subr.mxu0 0.0
    %259 = vmatpush1.msra.mxu0 0.0
    %260 = vmatprep.subr.mxu0 0.0
    %261 = vmatpush1.msra.mxu0 0.0
    %262 = vmatprep.subr.mxu0 0.0
    %263 = vmatpush1.msra.mxu0 0.0
    %264 = vmatprep.subr.mxu0 0.0
    %265 = vmatpush1.msra.mxu0 0.0
    %266 = vmatprep.subr.mxu0 0.0
    %267 = vmatpush1.msra.mxu0 0.0
    %268 = vmatprep.subr.mxu0 0.0
    %269 = vmatpush1.msra.mxu0 0.0
    %270 = vmatprep.subr.mxu0 0.0
    %271 = vmatpush1.msra.mxu0 0.0
    %272 = vmatprep.subr.mxu0 0.0
    %273 = vmatpush1.msra.mxu0 0.0
    %274 = vmatprep.subr.mxu0 0.0
    %275 = vmatpush1.msra.mxu0 0.0
    %276 = vmatprep.subr.mxu0 0.0
    %277 = vmatpush1.msra.mxu0 0.0
    %278 = vmatprep.subr.mxu0 0.0
    %279 = vmatpush1.msra.mxu0 0.0
    %280 = vmatprep.subr.mxu0 0.0
    %281 = vmatpush1.msra.mxu0 0.0
    %282 = vmatprep.subr.mxu0 0.0
    %283 = vmatpush1.msra.mxu0 0.0
    %284 = vmatprep.subr.mxu0 0.0
    %285 = vmatpush1.msra.mxu0 0.0
    %286 = vmatprep.subr.mxu0 0.0
    %287 = vmatpush1.msra.mxu0 0.0
    %288 = vmatprep.subr.mxu0 0.0
    %289 = vmatpush1.msra.mxu0 0.0
    %290 = vmatprep.subr.mxu0 0.0
    %291 = vmatpush1.msra.mxu0 0.0
    %292 = vmatprep.subr.mxu0 0.0
    %293 = vmatpush1.msra.mxu0 0.0
    %294 = vmatprep.subr.mxu0 0.0
    %295 = vmatpush1.msra.mxu0 0.0
    %296 = vmatprep.subr.mxu0 0.0
    %297 = vmatpush1.msra.mxu0 0.0
    %298 = vmatprep.subr.mxu0 0.0
    %299 = vmatpush1.msra.mxu0 0.0
    %300 = vmatprep.subr.mxu0 0.0
    %301 = vmatpush1.msra.mxu0 0.0
    %302 = vmatprep.mubr.f32.mxu0 0.0
    %303 = vmatmul.mubr.f32.gmra.mrb[0].mxu0 %v236
    %v304 = vpop.f32.mrb[0].mxu0
    %v305 = vadd.f32 0.0, %v304
    %v306 = vpop.f32.mrb[0].mxu0
    %307 = vdwg.mxu0
    %v308 = vrcp.pop %v230
    %v309 = vmul.f32 %v305, %v308
    %310 = vrot.lane.b32.xlu0 %v135, 120
    %v311 = vpop.permute.xlu0 %310
    %v312 = vsel %vm146, %v311, 0
    %314 = vmatprep.subr.mxu0 0.0
    %315 = vmatpush1.xpose.msra.mxu0 %v150
    %316 = vmatprep.subr.mxu0 0.0
    %317 = vmatpush1.xpose.msra.mxu0 0.0
    %318 = vmatprep.subr.mxu0 0.0
    %319 = vmatpush1.xpose.msra.mxu0 0.0
    %320 = vmatprep.subr.mxu0 0.0
    %321 = vmatpush1.xpose.msra.mxu0 0.0
    %322 = vmatprep.subr.mxu0 0.0
    %323 = vmatpush1.xpose.msra.mxu0 0.0
    %324 = vmatprep.subr.mxu0 0.0
    %325 = vmatpush1.xpose.msra.mxu0 0.0
    %326 = vmatprep.subr.mxu0 0.0
    %327 = vmatpush1.xpose.msra.mxu0 0.0
    %328 = vmatprep.subr.mxu0 0.0
    %329 = vmatpush1.xpose.msra.mxu0 0.0
    %330 = vmatprep.subr.mxu0 0.0
    %331 = vmatpush1.xpose.msra.mxu0 0.0
    %332 = vmatprep.subr.mxu0 0.0
    %333 = vmatpush1.xpose.msra.mxu0 0.0
    %334 = vmatprep.subr.mxu0 0.0
    %335 = vmatpush1.xpose.msra.mxu0 0.0
    %336 = vmatprep.subr.mxu0 0.0
    %337 = vmatpush1.xpose.msra.mxu0 0.0
    %338 = vmatprep.subr.mxu0 0.0
    %339 = vmatpush1.xpose.msra.mxu0 0.0
    %340 = vmatprep.subr.mxu0 0.0
    %341 = vmatpush1.xpose.msra.mxu0 0.0
    %342 = vmatprep.subr.mxu0 0.0
    %343 = vmatpush1.xpose.msra.mxu0 0.0
    %344 = vmatprep.subr.mxu0 0.0
    %345 = vmatpush1.xpose.msra.mxu0 0.0
    %346 = vmatprep.subr.mxu0 0.0
    %347 = vmatpush1.xpose.msra.mxu0 0.0
    %348 = vmatprep.subr.mxu0 0.0
    %349 = vmatpush1.xpose.msra.mxu0 0.0
    %350 = vmatprep.subr.mxu0 0.0
    %351 = vmatpush1.xpose.msra.mxu0 0.0
    %352 = vmatprep.subr.mxu0 0.0
    %353 = vmatpush1.xpose.msra.mxu0 0.0
    %354 = vmatprep.subr.mxu0 0.0
    %355 = vmatpush1.xpose.msra.mxu0 0.0
    %356 = vmatprep.subr.mxu0 0.0
    %357 = vmatpush1.xpose.msra.mxu0 0.0
    %358 = vmatprep.subr.mxu0 0.0
    %359 = vmatpush1.xpose.msra.mxu0 0.0
    %360 = vmatprep.subr.mxu0 0.0
    %361 = vmatpush1.xpose.msra.mxu0 0.0
    %362 = vmatprep.subr.mxu0 0.0
    %363 = vmatpush1.xpose.msra.mxu0 0.0
    %364 = vmatprep.subr.mxu0 0.0
    %365 = vmatpush1.xpose.msra.mxu0 0.0
    %366 = vmatprep.subr.mxu0 0.0
    %367 = vmatpush1.xpose.msra.mxu0 0.0
    %368 = vmatprep.subr.mxu0 0.0
    %369 = vmatpush1.xpose.msra.mxu0 0.0
    %370 = vmatprep.subr.mxu0 0.0
    %371 = vmatpush1.xpose.msra.mxu0 0.0
    %372 = vmatprep.subr.mxu0 0.0
    %373 = vmatpush1.xpose.msra.mxu0 0.0
    %374 = vmatprep.subr.mxu0 0.0
    %375 = vmatpush1.xpose.msra.mxu0 0.0
    %376 = vmatprep.subr.mxu0 0.0
    %377 = vmatpush1.xpose.msra.mxu0 0.0
    %378 = vmatprep.mubr.f32.mxu0 0.0
    %379 = vmatmul.mubr.f32.gmra.mrb[0].mxu0 %v312
    %v380 = vpop.f32.mrb[0].mxu0
    %v381 = vadd.f32 %v142, %v380
    %v382 = vpop.f32.mrb[0].mxu0
    %383 = vdwg.mxu0
    %v384 = vsel %vm146, %v381, -inf
    %385 = vmax.xlane.f32.xlu0 %v384
    %v386 = vpop.xlane.xlu0 %385
    %v387 = vsub.f32 %v381, %v386
    %v388 = vmul.f32 %v387, 1.442695
    %v389 = vpow.pop %v388
    %v390 = vsel %vm146, %v389, 0.0
    %391 = vadd.xlane.f32.xlu0 %v390
    %v392 = vpop.xlane.xlu0 %391
    %v394 = vsel %vm146, %v389, 0
    %396 = vmatprep.subr.mxu0 0.0
    %397 = vmatpush1.msra.mxu0 %v233
    %398 = vmatprep.subr.mxu0 0.0
    %399 = vmatpush1.msra.mxu0 0.0
    %400 = vmatprep.subr.mxu0 0.0
    %401 = vmatpush1.msra.mxu0 0.0
    %402 = vmatprep.subr.mxu0 0.0
    %403 = vmatpush1.msra.mxu0 0.0
    %404 = vmatprep.subr.mxu0 0.0
    %405 = vmatpush1.msra.mxu0 0.0
    %406 = vmatprep.subr.mxu0 0.0
    %407 = vmatpush1.msra.mxu0 0.0
    %408 = vmatprep.subr.mxu0 0.0
    %409 = vmatpush1.msra.mxu0 0.0
    %410 = vmatprep.subr.mxu0 0.0
    %411 = vmatpush1.msra.mxu0 0.0
    %412 = vmatprep.subr.mxu0 0.0
    %413 = vmatpush1.msra.mxu0 0.0
    %414 = vmatprep.subr.mxu0 0.0
    %415 = vmatpush1.msra.mxu0 0.0
    %416 = vmatprep.subr.mxu0 0.0
    %417 = vmatpush1.msra.mxu0 0.0
    %418 = vmatprep.subr.mxu0 0.0
    %419 = vmatpush1.msra.mxu0 0.0
    %420 = vmatprep.subr.mxu0 0.0
    %421 = vmatpush1.msra.mxu0 0.0
    %422 = vmatprep.subr.mxu0 0.0
    %423 = vmatpush1.msra.mxu0 0.0
    %424 = vmatprep.subr.mxu0 0.0
    %425 = vmatpush1.msra.mxu0 0.0
    %426 = vmatprep.subr.mxu0 0.0
    %427 = vmatpush1.msra.mxu0 0.0
    %428 = vmatprep.subr.mxu0 0.0
    %429 = vmatpush1.msra.mxu0 0.0
    %430 = vmatprep.subr.mxu0 0.0
    %431 = vmatpush1.msra.mxu0 0.0
    %432 = vmatprep.subr.mxu0 0.0
    %433 = vmatpush1.msra.mxu0 0.0
    %434 = vmatprep.subr.mxu0 0.0
    %435 = vmatpush1.msra.mxu0 0.0
    %436 = vmatprep.subr.mxu0 0.0
    %437 = vmatpush1.msra.mxu0 0.0
    %438 = vmatprep.subr.mxu0 0.0
    %439 = vmatpush1.msra.mxu0 0.0
    %440 = vmatprep.subr.mxu0 0.0
    %441 = vmatpush1.msra.mxu0 0.0
    %442 = vmatprep.subr.mxu0 0.0
    %443 = vmatpush1.msra.mxu0 0.0
    %444 = vmatprep.subr.mxu0 0.0
    %445 = vmatpush1.msra.mxu0 0.0
    %446 = vmatprep.subr.mxu0 0.0
    %447 = vmatpush1.msra.mxu0 0.0
    %448 = vmatprep.subr.mxu0 0.0
    %449 = vmatpush1.msra.mxu0 0.0
    %450 = vmatprep.subr.mxu0 0.0
    %451 = vmatpush1.msra.mxu0 0.0
    %452 = vmatprep.subr.mxu0 0.0
    %453 = vmatpush1.msra.mxu0 0.0
    %454 = vmatprep.subr.mxu0 0.0
    %455 = vmatpush1.msra.mxu0 0.0
    %456 = vmatprep.subr.mxu0 0.0
    %457 = vmatpush1.msra.mxu0 0.0
    %458 = vmatprep.subr.mxu0 0.0
    %459 = vmatpush1.msra.mxu0 0.0
    %460 = vmatprep.mubr.f32.mxu0 0.0
    %461 = vmatmul.mubr.f32.gmra.mrb[0].mxu0 %v394
    %v462 = vpop.f32.mrb[0].mxu0
    %v463 = vadd.f32 0.0, %v462
    %v464 = vpop.f32.mrb[0].mxu0
    %465 = vdwg.mxu0
    %v466 = vrcp.pop %v392
    %v467 = vmul.f32 %v463, %v466
    %468 = vrot.lane.b32.xlu0 %v135, 112
    %v469 = vpop.permute.xlu0 %468
    %470 = vrot.lane.b32.xlu0 %v133, 88
    %v471 = vpop.permute.xlu0 %470
    %v472 = vsel %vm146, %v469, 0
    %v474 = vsel %vm146, %v471, 0
    %476 = vmatprep.subr.mxu0 0.0
    %477 = vmatpush1.xpose.msra.mxu0 %v474
    %478 = vmatprep.subr.mxu0 0.0
    %479 = vmatpush1.xpose.msra.mxu0 0.0
    %480 = vmatprep.subr.mxu0 0.0
    %481 = vmatpush1.xpose.msra.mxu0 0.0
    %482 = vmatprep.subr.mxu0 0.0
    %483 = vmatpush1.xpose.msra.mxu0 0.0
    %484 = vmatprep.subr.mxu0 0.0
    %485 = vmatpush1.xpose.msra.mxu0 0.0
    %486 = vmatprep.subr.mxu0 0.0
    %487 = vmatpush1.xpose.msra.mxu0 0.0
    %488 = vmatprep.subr.mxu0 0.0
    %489 = vmatpush1.xpose.msra.mxu0 0.0
    %490 = vmatprep.subr.mxu0 0.0
    %491 = vmatpush1.xpose.msra.mxu0 0.0
    %492 = vmatprep.subr.mxu0 0.0
    %493 = vmatpush1.xpose.msra.mxu0 0.0
    %494 = vmatprep.subr.mxu0 0.0
    %495 = vmatpush1.xpose.msra.mxu0 0.0
    %496 = vmatprep.subr.mxu0 0.0
    %497 = vmatpush1.xpose.msra.mxu0 0.0
    %498 = vmatprep.subr.mxu0 0.0
    %499 = vmatpush1.xpose.msra.mxu0 0.0
    %500 = vmatprep.subr.mxu0 0.0
    %501 = vmatpush1.xpose.msra.mxu0 0.0
    %502 = vmatprep.subr.mxu0 0.0
    %503 = vmatpush1.xpose.msra.mxu0 0.0
    %504 = vmatprep.subr.mxu0 0.0
    %505 = vmatpush1.xpose.msra.mxu0 0.0
    %506 = vmatprep.subr.mxu0 0.0
    %507 = vmatpush1.xpose.msra.mxu0 0.0
    %508 = vmatprep.subr.mxu0 0.0
    %509 = vmatpush1.xpose.msra.mxu0 0.0
    %510 = vmatprep.subr.mxu0 0.0
    %511 = vmatpush1.xpose.msra.mxu0 0.0
    %512 = vmatprep.subr.mxu0 0.0
    %513 = vmatpush1.xpose.msra.mxu0 0.0
    %514 = vmatprep.subr.mxu0 0.0
    %515 = vmatpush1.xpose.msra.mxu0 0.0
    %516 = vmatprep.subr.mxu0 0.0
    %517 = vmatpush1.xpose.msra.mxu0 0.0
    %518 = vmatprep.subr.mxu0 0.0
    %519 = vmatpush1.xpose.msra.mxu0 0.0
    %520 = vmatprep.subr.mxu0 0.0
    %521 = vmatpush1.xpose.msra.mxu0 0.0
    %522 = vmatprep.subr.mxu0 0.0
    %523 = vmatpush1.xpose.msra.mxu0 0.0
    %524 = vmatprep.subr.mxu0 0.0
    %525 = vmatpush1.xpose.msra.mxu0 0.0
    %526 = vmatprep.subr.mxu0 0.0
    %527 = vmatpush1.xpose.msra.mxu0 0.0
    %528 = vmatprep.subr.mxu0 0.0
    %529 = vmatpush1.xpose.msra.mxu0 0.0
    %530 = vmatprep.subr.mxu0 0.0
    %531 = vmatpush1.xpose.msra.mxu0 0.0
    %532 = vmatprep.subr.mxu0 0.0
    %533 = vmatpush1.xpose.msra.mxu0 0.0
    %534 = vmatprep.subr.mxu0 0.0
    %535 = vmatpush1.xpose.msra.mxu0 0.0
    %536 = vmatprep.subr.mxu0 0.0
    %537 = vmatpush1.xpose.msra.mxu0 0.0
    %538 = vmatprep.subr.mxu0 0.0
    %539 = vmatpush1.xpose.msra.mxu0 0.0
    %540 = vmatprep.mubr.f32.mxu0 0.0
    %541 = vmatmul.mubr.f32.gmra.mrb[0].mxu0 %v472
    %v542 = vpop.f32.mrb[0].mxu0
    %v543 = vadd.f32 %v142, %v542
    %v544 = vpop.f32.mrb[0].mxu0
    %545 = vdwg.mxu0
    %v546 = vsel %vm146, %v543, -inf
    %547 = vmax.xlane.f32.xlu0 %v546
    %v548 = vpop.xlane.xlu0 %547
    %v549 = vsub.f32 %v543, %v548
    %v550 = vmul.f32 %v549, 1.442695
    %v551 = vpow.pop %v550
    %v552 = vsel %vm146, %v551, 0.0
    %553 = vadd.xlane.f32.xlu0 %v552
    %v554 = vpop.xlane.xlu0 %553
    %555 = vrot.lane.b32.xlu0 %v101, 72
    %v556 = vpop.permute.xlu0 %555
    %v559 = vsel %vm146, %v551, 0
    %561 = vmatprep.subr.mxu0 0.0
    %562 = vmatpush1.msra.mxu0 %v556
    %563 = vmatprep.subr.mxu0 0.0
    %564 = vmatpush1.msra.mxu0 0.0
    %565 = vmatprep.subr.mxu0 0.0
    %566 = vmatpush1.msra.mxu0 0.0
    %567 = vmatprep.subr.mxu0 0.0
    %568 = vmatpush1.msra.mxu0 0.0
    %569 = vmatprep.subr.mxu0 0.0
    %570 = vmatpush1.msra.mxu0 0.0
    %571 = vmatprep.subr.mxu0 0.0
    %572 = vmatpush1.msra.mxu0 0.0
    %573 = vmatprep.subr.mxu0 0.0
    %574 = vmatpush1.msra.mxu0 0.0
    %575 = vmatprep.subr.mxu0 0.0
    %576 = vmatpush1.msra.mxu0 0.0
    %577 = vmatprep.subr.mxu0 0.0
    %578 = vmatpush1.msra.mxu0 0.0
    %579 = vmatprep.subr.mxu0 0.0
    %580 = vmatpush1.msra.mxu0 0.0
    %581 = vmatprep.subr.mxu0 0.0
    %582 = vmatpush1.msra.mxu0 0.0
    %583 = vmatprep.subr.mxu0 0.0
    %584 = vmatpush1.msra.mxu0 0.0
    %585 = vmatprep.subr.mxu0 0.0
    %586 = vmatpush1.msra.mxu0 0.0
    %587 = vmatprep.subr.mxu0 0.0
    %588 = vmatpush1.msra.mxu0 0.0
    %589 = vmatprep.subr.mxu0 0.0
    %590 = vmatpush1.msra.mxu0 0.0
    %591 = vmatprep.subr.mxu0 0.0
    %592 = vmatpush1.msra.mxu0 0.0
    %593 = vmatprep.subr.mxu0 0.0
    %594 = vmatpush1.msra.mxu0 0.0
    %595 = vmatprep.subr.mxu0 0.0
    %596 = vmatpush1.msra.mxu0 0.0
    %597 = vmatprep.subr.mxu0 0.0
    %598 = vmatpush1.msra.mxu0 0.0
    %599 = vmatprep.subr.mxu0 0.0
    %600 = vmatpush1.msra.mxu0 0.0
    %601 = vmatprep.subr.mxu0 0.0
    %602 = vmatpush1.msra.mxu0 0.0
    %603 = vmatprep.subr.mxu0 0.0
    %604 = vmatpush1.msra.mxu0 0.0
    %605 = vmatprep.subr.mxu0 0.0
    %606 = vmatpush1.msra.mxu0 0.0
    %607 = vmatprep.subr.mxu0 0.0
    %608 = vmatpush1.msra.mxu0 0.0
    %609 = vmatprep.subr.mxu0 0.0
    %610 = vmatpush1.msra.mxu0 0.0
    %611 = vmatprep.subr.mxu0 0.0
    %612 = vmatpush1.msra.mxu0 0.0
    %613 = vmatprep.subr.mxu0 0.0
    %614 = vmatpush1.msra.mxu0 0.0
    %615 = vmatprep.subr.mxu0 0.0
    %616 = vmatpush1.msra.mxu0 0.0
    %617 = vmatprep.subr.mxu0 0.0
    %618 = vmatpush1.msra.mxu0 0.0
    %619 = vmatprep.subr.mxu0 0.0
    %620 = vmatpush1.msra.mxu0 0.0
    %621 = vmatprep.subr.mxu0 0.0
    %622 = vmatpush1.msra.mxu0 0.0
    %623 = vmatprep.subr.mxu0 0.0
    %624 = vmatpush1.msra.mxu0 0.0
    %625 = vmatprep.mubr.f32.mxu0 0.0
    %626 = vmatmul.mubr.f32.gmra.mrb[0].mxu0 %v559
    %v627 = vpop.f32.mrb[0].mxu0
    %v628 = vadd.f32 0.0, %v627
    %v629 = vpop.f32.mrb[0].mxu0
    %630 = vdwg.mxu0
    %v631 = vrcp.pop %v554
    %v632 = vmul.f32 %v628, %v631
    %633 = vrot.lane.b32.xlu0 %v135, 104
    %v634 = vpop.permute.xlu0 %633
    %v635 = vsel %vm146, %v634, 0
    %637 = vmatprep.subr.mxu0 0.0
    %638 = vmatpush1.xpose.msra.mxu0 %v474
    %639 = vmatprep.subr.mxu0 0.0
    %640 = vmatpush1.xpose.msra.mxu0 0.0
    %641 = vmatprep.subr.mxu0 0.0
    %642 = vmatpush1.xpose.msra.mxu0 0.0
    %643 = vmatprep.subr.mxu0 0.0
    %644 = vmatpush1.xpose.msra.mxu0 0.0
    %645 = vmatprep.subr.mxu0 0.0
    %646 = vmatpush1.xpose.msra.mxu0 0.0
    %647 = vmatprep.subr.mxu0 0.0
    %648 = vmatpush1.xpose.msra.mxu0 0.0
    %649 = vmatprep.subr.mxu0 0.0
    %650 = vmatpush1.xpose.msra.mxu0 0.0
    %651 = vmatprep.subr.mxu0 0.0
    %652 = vmatpush1.xpose.msra.mxu0 0.0
    %653 = vmatprep.subr.mxu0 0.0
    %654 = vmatpush1.xpose.msra.mxu0 0.0
    %655 = vmatprep.subr.mxu0 0.0
    %656 = vmatpush1.xpose.msra.mxu0 0.0
    %657 = vmatprep.subr.mxu0 0.0
    %658 = vmatpush1.xpose.msra.mxu0 0.0
    %659 = vmatprep.subr.mxu0 0.0
    %660 = vmatpush1.xpose.msra.mxu0 0.0
    %661 = vmatprep.subr.mxu0 0.0
    %662 = vmatpush1.xpose.msra.mxu0 0.0
    %663 = vmatprep.subr.mxu0 0.0
    %664 = vmatpush1.xpose.msra.mxu0 0.0
    %665 = vmatprep.subr.mxu0 0.0
    %666 = vmatpush1.xpose.msra.mxu0 0.0
    %667 = vmatprep.subr.mxu0 0.0
    %668 = vmatpush1.xpose.msra.mxu0 0.0
    %669 = vmatprep.subr.mxu0 0.0
    %670 = vmatpush1.xpose.msra.mxu0 0.0
    %671 = vmatprep.subr.mxu0 0.0
    %672 = vmatpush1.xpose.msra.mxu0 0.0
    %673 = vmatprep.subr.mxu0 0.0
    %674 = vmatpush1.xpose.msra.mxu0 0.0
    %675 = vmatprep.subr.mxu0 0.0
    %676 = vmatpush1.xpose.msra.mxu0 0.0
    %677 = vmatprep.subr.mxu0 0.0
    %678 = vmatpush1.xpose.msra.mxu0 0.0
    %679 = vmatprep.subr.mxu0 0.0
    %680 = vmatpush1.xpose.msra.mxu0 0.0
    %681 = vmatprep.subr.mxu0 0.0
    %682 = vmatpush1.xpose.msra.mxu0 0.0
    %683 = vmatprep.subr.mxu0 0.0
    %684 = vmatpush1.xpose.msra.mxu0 0.0
    %685 = vmatprep.subr.mxu0 0.0
    %686 = vmatpush1.xpose.msra.mxu0 0.0
    %687 = vmatprep.subr.mxu0 0.0
    %688 = vmatpush1.xpose.msra.mxu0 0.0
    %689 = vmatprep.subr.mxu0 0.0
    %690 = vmatpush1.xpose.msra.mxu0 0.0
    %691 = vmatprep.subr.mxu0 0.0
    %692 = vmatpush1.xpose.msra.mxu0 0.0
    %693 = vmatprep.subr.mxu0 0.0
    %694 = vmatpush1.xpose.msra.mxu0 0.0
    %695 = vmatprep.subr.mxu0 0.0
    %696 = vmatpush1.xpose.msra.mxu0 0.0
    %697 = vmatprep.subr.mxu0 0.0
    %698 = vmatpush1.xpose.msra.mxu0 0.0
    %699 = vmatprep.subr.mxu0 0.0
    %700 = vmatpush1.xpose.msra.mxu0 0.0
    %701 = vmatprep.mubr.f32.mxu0 0.0
    %702 = vmatmul.mubr.f32.gmra.mrb[0].mxu0 %v635
    %v703 = vpop.f32.mrb[0].mxu0
    %v704 = vadd.f32 %v142, %v703
    %v705 = vpop.f32.mrb[0].mxu0
    %706 = vdwg.mxu0
    %v707 = vsel %vm146, %v704, -inf
    %708 = vmax.xlane.f32.xlu0 %v707
    %v709 = vpop.xlane.xlu0 %708
    %v710 = vsub.f32 %v704, %v709
    %v711 = vmul.f32 %v710, 1.442695
    %v712 = vpow.pop %v711
    %v713 = vsel %vm146, %v712, 0.0
    %714 = vadd.xlane.f32.xlu0 %v713
    %v715 = vpop.xlane.xlu0 %714
    %v717 = vsel %vm146, %v712, 0
    %719 = vmatprep.subr.mxu0 0.0
    %720 = vmatpush1.msra.mxu0 %v556
    %721 = vmatprep.subr.mxu0 0.0
    %722 = vmatpush1.msra.mxu0 0.0
    %723 = vmatprep.subr.mxu0 0.0
    %724 = vmatpush1.msra.mxu0 0.0
    %725 = vmatprep.subr.mxu0 0.0
    %726 = vmatpush1.msra.mxu0 0.0
    %727 = vmatprep.subr.mxu0 0.0
    %728 = vmatpush1.msra.mxu0 0.0
    %729 = vmatprep.subr.mxu0 0.0
    %730 = vmatpush1.msra.mxu0 0.0
    %731 = vmatprep.subr.mxu0 0.0
    %732 = vmatpush1.msra.mxu0 0.0
    %733 = vmatprep.subr.mxu0 0.0
    %734 = vmatpush1.msra.mxu0 0.0
    %735 = vmatprep.subr.mxu0 0.0
    %736 = vmatpush1.msra.mxu0 0.0
    %737 = vmatprep.subr.mxu0 0.0
    %738 = vmatpush1.msra.mxu0 0.0
    %739 = vmatprep.subr.mxu0 0.0
    %740 = vmatpush1.msra.mxu0 0.0
    %741 = vmatprep.subr.mxu0 0.0
    %742 = vmatpush1.msra.mxu0 0.0
    %743 = vmatprep.subr.mxu0 0.0
    %744 = vmatpush1.msra.mxu0 0.0
    %745 = vmatprep.subr.mxu0 0.0
    %746 = vmatpush1.msra.mxu0 0.0
    %747 = vmatprep.subr.mxu0 0.0
    %748 = vmatpush1.msra.mxu0 0.0
    %749 = vmatprep.subr.mxu0 0.0
    %750 = vmatpush1.msra.mxu0 0.0
    %751 = vmatprep.subr.mxu0 0.0
    %752 = vmatpush1.msra.mxu0 0.0
    %753 = vmatprep.subr.mxu0 0.0
    %754 = vmatpush1.msra.mxu0 0.0
    %755 = vmatprep.subr.mxu0 0.0
    %756 = vmatpush1.msra.mxu0 0.0
    %757 = vmatprep.subr.mxu0 0.0
    %758 = vmatpush1.msra.mxu0 0.0
    %759 = vmatprep.subr.mxu0 0.0
    %760 = vmatpush1.msra.mxu0 0.0
    %761 = vmatprep.subr.mxu0 0.0
    %762 = vmatpush1.msra.mxu0 0.0
    %763 = vmatprep.subr.mxu0 0.0
    %764 = vmatpush1.msra.mxu0 0.0
    %765 = vmatprep.subr.mxu0 0.0
    %766 = vmatpush1.msra.mxu0 0.0
    %767 = vmatprep.subr.mxu0 0.0
    %768 = vmatpush1.msra.mxu0 0.0
    %769 = vmatprep.subr.mxu0 0.0
    %770 = vmatpush1.msra.mxu0 0.0
    %771 = vmatprep.subr.mxu0 0.0
    %772 = vmatpush1.msra.mxu0 0.0
    %773 = vmatprep.subr.mxu0 0.0
    %774 = vmatpush1.msra.mxu0 0.0
    %775 = vmatprep.subr.mxu0 0.0
    %776 = vmatpush1.msra.mxu0 0.0
    %777 = vmatprep.subr.mxu0 0.0
    %778 = vmatpush1.msra.mxu0 0.0
    %779 = vmatprep.subr.mxu0 0.0
    %780 = vmatpush1.msra.mxu0 0.0
    %781 = vmatprep.subr.mxu0 0.0
    %782 = vmatpush1.msra.mxu0 0.0
    %783 = vmatprep.mubr.f32.mxu0 0.0
    %784 = vmatmul.mubr.f32.gmra.mrb[0].mxu0 %v717
    %v785 = vpop.f32.mrb[0].mxu0
    %v786 = vadd.f32 0.0, %v785
    %v787 = vpop.f32.mrb[0].mxu0
    %788 = vdwg.mxu0
    %v789 = vrcp.pop %v715
    %v790 = vmul.f32 %v786, %v789
    %792 = vrot.lane.b32.xlu0 %v467, 8
    %v793 = vpop.permute.xlu0 %792
    %796 = vrot.lane.b32.xlu0 %v632, 16
    %v797 = vpop.permute.xlu0 %796
    %800 = vrot.lane.b32.xlu0 %v790, 24
    %v801 = vpop.permute.xlu0 %800
    %v803 = vsel %vm146, %v309, %v793
    %vm804 = vcmask 130048
    %v805 = vsel %vm804, %v803, %v797
    %vm806 = vcmask 195584
    %v807 = vsel %vm806, %v805, %v801
    %809 = vrot.lane.b32.xlu0 %v134, 96
    %v810 = vpop.permute.xlu0 %809
    %v812 = vsel %vm146, %v136, 0
    %v814 = vsel %vm146, %v810, 0
    %816 = vmatprep.subr.mxu0 0.0
    %817 = vmatpush1.xpose.msra.mxu0 %v814
    %818 = vmatprep.subr.mxu0 0.0
    %819 = vmatpush1.xpose.msra.mxu0 0.0
    %820 = vmatprep.subr.mxu0 0.0
    %821 = vmatpush1.xpose.msra.mxu0 0.0
    %822 = vmatprep.subr.mxu0 0.0
    %823 = vmatpush1.xpose.msra.mxu0 0.0
    %824 = vmatprep.subr.mxu0 0.0
    %825 = vmatpush1.xpose.msra.mxu0 0.0
    %826 = vmatprep.subr.mxu0 0.0
    %827 = vmatpush1.xpose.msra.mxu0 0.0
    %828 = vmatprep.subr.mxu0 0.0
    %829 = vmatpush1.xpose.msra.mxu0 0.0
    %830 = vmatprep.subr.mxu0 0.0
    %831 = vmatpush1.xpose.msra.mxu0 0.0
    %832 = vmatprep.subr.mxu0 0.0
    %833 = vmatpush1.xpose.msra.mxu0 0.0
    %834 = vmatprep.subr.mxu0 0.0
    %835 = vmatpush1.xpose.msra.mxu0 0.0
    %836 = vmatprep.subr.mxu0 0.0
    %837 = vmatpush1.xpose.msra.mxu0 0.0
    %838 = vmatprep.subr.mxu0 0.0
    %839 = vmatpush1.xpose.msra.mxu0 0.0
    %840 = vmatprep.subr.mxu0 0.0
    %841 = vmatpush1.xpose.msra.mxu0 0.0
    %842 = vmatprep.subr.mxu0 0.0
    %843 = vmatpush1.xpose.msra.mxu0 0.0
    %844 = vmatprep.subr.mxu0 0.0
    %845 = vmatpush1.xpose.msra.mxu0 0.0
    %846 = vmatprep.subr.mxu0 0.0
    %847 = vmatpush1.xpose.msra.mxu0 0.0
    %848 = vmatprep.subr.mxu0 0.0
    %849 = vmatpush1.xpose.msra.mxu0 0.0
    %850 = vmatprep.subr.mxu0 0.0
    %851 = vmatpush1.xpose.msra.mxu0 0.0
    %852 = vmatprep.subr.mxu0 0.0
    %853 = vmatpush1.xpose.msra.mxu0 0.0
    %854 = vmatprep.subr.mxu0 0.0
    %855 = vmatpush1.xpose.msra.mxu0 0.0
    %856 = vmatprep.subr.mxu0 0.0
    %857 = vmatpush1.xpose.msra.mxu0 0.0
    %858 = vmatprep.subr.mxu0 0.0
    %859 = vmatpush1.xpose.msra.mxu0 0.0
    %860 = vmatprep.subr.mxu0 0.0
    %861 = vmatpush1.xpose.msra.mxu0 0.0
    %862 = vmatprep.subr.mxu0 0.0
    %863 = vmatpush1.xpose.msra.mxu0 0.0
    %864 = vmatprep.subr.mxu0 0.0
    %865 = vmatpush1.xpose.msra.mxu0 0.0
    %866 = vmatprep.subr.mxu0 0.0
    %867 = vmatpush1.xpose.msra.mxu0 0.0
    %868 = vmatprep.subr.mxu0 0.0
    %869 = vmatpush1.xpose.msra.mxu0 0.0
    %870 = vmatprep.subr.mxu0 0.0
    %871 = vmatpush1.xpose.msra.mxu0 0.0
    %872 = vmatprep.subr.mxu0 0.0
    %873 = vmatpush1.xpose.msra.mxu0 0.0
    %874 = vmatprep.subr.mxu0 0.0
    %875 = vmatpush1.xpose.msra.mxu0 0.0
    %876 = vmatprep.subr.mxu0 0.0
    %877 = vmatpush1.xpose.msra.mxu0 0.0
    %878 = vmatprep.subr.mxu0 0.0
    %879 = vmatpush1.xpose.msra.mxu0 0.0
    %880 = vmatprep.mubr.f32.mxu0 0.0
    %881 = vmatmul.mubr.f32.gmra.mrb[0].mxu0 %v812
    %v882 = vpop.f32.mrb[0].mxu0
    %v883 = vadd.f32 %v142, %v882
    %v884 = vpop.f32.mrb[0].mxu0
    %885 = vdwg.mxu0
    %v886 = vsel %vm146, %v883, -inf
    %887 = vmax.xlane.f32.xlu0 %v886
    %v888 = vpop.xlane.xlu0 %887
    %v889 = vsub.f32 %v883, %v888
    %v890 = vmul.f32 %v889, 1.442695
    %v891 = vpow.pop %v890
    %v892 = vsel %vm146, %v891, 0.0
    %893 = vadd.xlane.f32.xlu0 %v892
    %v894 = vpop.xlane.xlu0 %893
    %896 = vrot.lane.b32.xlu0 %v106, 80
    %v897 = vpop.permute.xlu0 %896
    %v900 = vsel %vm146, %v891, 0
    %902 = vmatprep.subr.mxu0 0.0
    %903 = vmatpush1.msra.mxu0 %v897
    %904 = vmatprep.subr.mxu0 0.0
    %905 = vmatpush1.msra.mxu0 0.0
    %906 = vmatprep.subr.mxu0 0.0
    %907 = vmatpush1.msra.mxu0 0.0
    %908 = vmatprep.subr.mxu0 0.0
    %909 = vmatpush1.msra.mxu0 0.0
    %910 = vmatprep.subr.mxu0 0.0
    %911 = vmatpush1.msra.mxu0 0.0
    %912 = vmatprep.subr.mxu0 0.0
    %913 = vmatpush1.msra.mxu0 0.0
    %914 = vmatprep.subr.mxu0 0.0
    %915 = vmatpush1.msra.mxu0 0.0
    %916 = vmatprep.subr.mxu0 0.0
    %917 = vmatpush1.msra.mxu0 0.0
    %918 = vmatprep.subr.mxu0 0.0
    %919 = vmatpush1.msra.mxu0 0.0
    %920 = vmatprep.subr.mxu0 0.0
    %921 = vmatpush1.msra.mxu0 0.0
    %922 = vmatprep.subr.mxu0 0.0
    %923 = vmatpush1.msra.mxu0 0.0
    %924 = vmatprep.subr.mxu0 0.0
    %925 = vmatpush1.msra.mxu0 0.0
    %926 = vmatprep.subr.mxu0 0.0
    %927 = vmatpush1.msra.mxu0 0.0
    %928 = vmatprep.subr.mxu0 0.0
    %929 = vmatpush1.msra.mxu0 0.0
    %930 = vmatprep.subr.mxu0 0.0
    %931 = vmatpush1.msra.mxu0 0.0
    %932 = vmatprep.subr.mxu0 0.0
    %933 = vmatpush1.msra.mxu0 0.0
    %934 = vmatprep.subr.mxu0 0.0
    %935 = vmatpush1.msra.mxu0 0.0
    %936 = vmatprep.subr.mxu0 0.0
    %937 = vmatpush1.msra.mxu0 0.0
    %938 = vmatprep.subr.mxu0 0.0
    %939 = vmatpush1.msra.mxu0 0.0
    %940 = vmatprep.subr.mxu0 0.0
    %941 = vmatpush1.msra.mxu0 0.0
    %942 = vmatprep.subr.mxu0 0.0
    %943 = vmatpush1.msra.mxu0 0.0
    %944 = vmatprep.subr.mxu0 0.0
    %945 = vmatpush1.msra.mxu0 0.0
    %946 = vmatprep.subr.mxu0 0.0
    %947 = vmatpush1.msra.mxu0 0.0
    %948 = vmatprep.subr.mxu0 0.0
    %949 = vmatpush1.msra.mxu0 0.0
    %950 = vmatprep.subr.mxu0 0.0
    %951 = vmatpush1.msra.mxu0 0.0
    %952 = vmatprep.subr.mxu0 0.0
    %953 = vmatpush1.msra.mxu0 0.0
    %954 = vmatprep.subr.mxu0 0.0
    %955 = vmatpush1.msra.mxu0 0.0
    %956 = vmatprep.subr.mxu0 0.0
    %957 = vmatpush1.msra.mxu0 0.0
    %958 = vmatprep.subr.mxu0 0.0
    %959 = vmatpush1.msra.mxu0 0.0
    %960 = vmatprep.subr.mxu0 0.0
    %961 = vmatpush1.msra.mxu0 0.0
    %962 = vmatprep.subr.mxu0 0.0
    %963 = vmatpush1.msra.mxu0 0.0
    %964 = vmatprep.subr.mxu0 0.0
    %965 = vmatpush1.msra.mxu0 0.0
    %966 = vmatprep.mubr.f32.mxu0 0.0
    %967 = vmatmul.mubr.f32.gmra.mrb[0].mxu0 %v900
    %v968 = vpop.f32.mrb[0].mxu0
    %v969 = vadd.f32 0.0, %v968
    %v970 = vpop.f32.mrb[0].mxu0
    %971 = vdwg.mxu0
    %v972 = vrcp.pop %v894
    %v973 = vmul.f32 %v969, %v972
    %974 = vrot.lane.b32.xlu0 %v136, 120
    %v975 = vpop.permute.xlu0 %974
    %v976 = vsel %vm146, %v975, 0
    %978 = vmatprep.subr.mxu0 0.0
    %979 = vmatpush1.xpose.msra.mxu0 %v814
    %980 = vmatprep.subr.mxu0 0.0
    %981 = vmatpush1.xpose.msra.mxu0 0.0
    %982 = vmatprep.subr.mxu0 0.0
    %983 = vmatpush1.xpose.msra.mxu0 0.0
    %984 = vmatprep.subr.mxu0 0.0
    %985 = vmatpush1.xpose.msra.mxu0 0.0
    %986 = vmatprep.subr.mxu0 0.0
    %987 = vmatpush1.xpose.msra.mxu0 0.0
    %988 = vmatprep.subr.mxu0 0.0
    %989 = vmatpush1.xpose.msra.mxu0 0.0
    %990 = vmatprep.subr.mxu0 0.0
    %991 = vmatpush1.xpose.msra.mxu0 0.0
    %992 = vmatprep.subr.mxu0 0.0
    %993 = vmatpush1.xpose.msra.mxu0 0.0
    %994 = vmatprep.subr.mxu0 0.0
    %995 = vmatpush1.xpose.msra.mxu0 0.0
    %996 = vmatprep.subr.mxu0 0.0
    %997 = vmatpush1.xpose.msra.mxu0 0.0
    %998 = vmatprep.subr.mxu0 0.0
    %999 = vmatpush1.xpose.msra.mxu0 0.0
    %1000 = vmatprep.subr.mxu0 0.0
    %1001 = vmatpush1.xpose.msra.mxu0 0.0
    %1002 = vmatprep.subr.mxu0 0.0
    %1003 = vmatpush1.xpose.msra.mxu0 0.0
    %1004 = vmatprep.subr.mxu0 0.0
    %1005 = vmatpush1.xpose.msra.mxu0 0.0
    %1006 = vmatprep.subr.mxu0 0.0
    %1007 = vmatpush1.xpose.msra.mxu0 0.0
    %1008 = vmatprep.subr.mxu0 0.0
    %1009 = vmatpush1.xpose.msra.mxu0 0.0
    %1010 = vmatprep.subr.mxu0 0.0
    %1011 = vmatpush1.xpose.msra.mxu0 0.0
    %1012 = vmatprep.subr.mxu0 0.0
    %1013 = vmatpush1.xpose.msra.mxu0 0.0
    %1014 = vmatprep.subr.mxu0 0.0
    %1015 = vmatpush1.xpose.msra.mxu0 0.0
    %1016 = vmatprep.subr.mxu0 0.0
    %1017 = vmatpush1.xpose.msra.mxu0 0.0
    %1018 = vmatprep.subr.mxu0 0.0
    %1019 = vmatpush1.xpose.msra.mxu0 0.0
    %1020 = vmatprep.subr.mxu0 0.0
    %1021 = vmatpush1.xpose.msra.mxu0 0.0
    %1022 = vmatprep.subr.mxu0 0.0
    %1023 = vmatpush1.xpose.msra.mxu0 0.0
    %1024 = vmatprep.subr.mxu0 0.0
    %1025 = vmatpush1.xpose.msra.mxu0 0.0
    %1026 = vmatprep.subr.mxu0 0.0
    %1027 = vmatpush1.xpose.msra.mxu0 0.0
    %1028 = vmatprep.subr.mxu0 0.0
    %1029 = vmatpush1.xpose.msra.mxu0 0.0
    %1030 = vmatprep.subr.mxu0 0.0
    %1031 = vmatpush1.xpose.msra.mxu0 0.0
    %1032 = vmatprep.subr.mxu0 0.0
    %1033 = vmatpush1.xpose.msra.mxu0 0.0
    %1034 = vmatprep.subr.mxu0 0.0
    %1035 = vmatpush1.xpose.msra.mxu0 0.0
    %1036 = vmatprep.subr.mxu0 0.0
    %1037 = vmatpush1.xpose.msra.mxu0 0.0
    %1038 = vmatprep.subr.mxu0 0.0
    %1039 = vmatpush1.xpose.msra.mxu0 0.0
    %1040 = vmatprep.subr.mxu0 0.0
    %1041 = vmatpush1.xpose.msra.mxu0 0.0
    %1042 = vmatprep.mubr.f32.mxu0 0.0
    %1043 = vmatmul.mubr.f32.gmra.mrb[0].mxu0 %v976
    %v1044 = vpop.f32.mrb[0].mxu0
    %v1045 = vadd.f32 %v142, %v1044
    %v1046 = vpop.f32.mrb[0].mxu0
    %1047 = vdwg.mxu0
    %v1048 = vsel %vm146, %v1045, -inf
    %1049 = vmax.xlane.f32.xlu0 %v1048
    %v1050 = vpop.xlane.xlu0 %1049
    %v1051 = vsub.f32 %v1045, %v1050
    %v1052 = vmul.f32 %v1051, 1.442695
    %v1053 = vpow.pop %v1052
    %v1054 = vsel %vm146, %v1053, 0.0
    %1055 = vadd.xlane.f32.xlu0 %v1054
    %v1056 = vpop.xlane.xlu0 %1055
    %v1058 = vsel %vm146, %v1053, 0
    %1060 = vmatprep.subr.mxu0 0.0
    %1061 = vmatpush1.msra.mxu0 %v897
    %1062 = vmatprep.subr.mxu0 0.0
    %1063 = vmatpush1.msra.mxu0 0.0
    %1064 = vmatprep.subr.mxu0 0.0
    %1065 = vmatpush1.msra.mxu0 0.0
    %1066 = vmatprep.subr.mxu0 0.0
    %1067 = vmatpush1.msra.mxu0 0.0
    %1068 = vmatprep.subr.mxu0 0.0
    %1069 = vmatpush1.msra.mxu0 0.0
    %1070 = vmatprep.subr.mxu0 0.0
    %1071 = vmatpush1.msra.mxu0 0.0
    %1072 = vmatprep.subr.mxu0 0.0
    %1073 = vmatpush1.msra.mxu0 0.0
    %1074 = vmatprep.subr.mxu0 0.0
    %1075 = vmatpush1.msra.mxu0 0.0
    %1076 = vmatprep.subr.mxu0 0.0
    %1077 = vmatpush1.msra.mxu0 0.0
    %1078 = vmatprep.subr.mxu0 0.0
    %1079 = vmatpush1.msra.mxu0 0.0
    %1080 = vmatprep.subr.mxu0 0.0
    %1081 = vmatpush1.msra.mxu0 0.0
    %1082 = vmatprep.subr.mxu0 0.0
    %1083 = vmatpush1.msra.mxu0 0.0
    %1084 = vmatprep.subr.mxu0 0.0
    %1085 = vmatpush1.msra.mxu0 0.0
    %1086 = vmatprep.subr.mxu0 0.0
    %1087 = vmatpush1.msra.mxu0 0.0
    %1088 = vmatprep.subr.mxu0 0.0
    %1089 = vmatpush1.msra.mxu0 0.0
    %1090 = vmatprep.subr.mxu0 0.0
    %1091 = vmatpush1.msra.mxu0 0.0
    %1092 = vmatprep.subr.mxu0 0.0
    %1093 = vmatpush1.msra.mxu0 0.0
    %1094 = vmatprep.subr.mxu0 0.0
    %1095 = vmatpush1.msra.mxu0 0.0
    %1096 = vmatprep.subr.mxu0 0.0
    %1097 = vmatpush1.msra.mxu0 0.0
    %1098 = vmatprep.subr.mxu0 0.0
    %1099 = vmatpush1.msra.mxu0 0.0
    %1100 = vmatprep.subr.mxu0 0.0
    %1101 = vmatpush1.msra.mxu0 0.0
    %1102 = vmatprep.subr.mxu0 0.0
    %1103 = vmatpush1.msra.mxu0 0.0
    %1104 = vmatprep.subr.mxu0 0.0
    %1105 = vmatpush1.msra.mxu0 0.0
    %1106 = vmatprep.subr.mxu0 0.0
    %1107 = vmatpush1.msra.mxu0 0.0
    %1108 = vmatprep.subr.mxu0 0.0
    %1109 = vmatpush1.msra.mxu0 0.0
    %1110 = vmatprep.subr.mxu0 0.0
    %1111 = vmatpush1.msra.mxu0 0.0
    %1112 = vmatprep.subr.mxu0 0.0
    %1113 = vmatpush1.msra.mxu0 0.0
    %1114 = vmatprep.subr.mxu0 0.0
    %1115 = vmatpush1.msra.mxu0 0.0
    %1116 = vmatprep.subr.mxu0 0.0
    %1117 = vmatpush1.msra.mxu0 0.0
    %1118 = vmatprep.subr.mxu0 0.0
    %1119 = vmatpush1.msra.mxu0 0.0
    %1120 = vmatprep.subr.mxu0 0.0
    %1121 = vmatpush1.msra.mxu0 0.0
    %1122 = vmatprep.subr.mxu0 0.0
    %1123 = vmatpush1.msra.mxu0 0.0
    %1124 = vmatprep.mubr.f32.mxu0 0.0
    %1125 = vmatmul.mubr.f32.gmra.mrb[0].mxu0 %v1058
    %v1126 = vpop.f32.mrb[0].mxu0
    %v1127 = vadd.f32 0.0, %v1126
    %v1128 = vpop.f32.mrb[0].mxu0
    %1129 = vdwg.mxu0
    %v1130 = vrcp.pop %v1056
    %v1131 = vmul.f32 %v1127, %v1130
    %1132 = vrot.lane.b32.xlu0 %v136, 112
    %v1133 = vpop.permute.xlu0 %1132
    %1134 = vrot.lane.b32.xlu0 %v134, 88
    %v1135 = vpop.permute.xlu0 %1134
    %v1136 = vsel %vm146, %v1133, 0
    %v1138 = vsel %vm146, %v1135, 0
    %1140 = vmatprep.subr.mxu0 0.0
    %1141 = vmatpush1.xpose.msra.mxu0 %v1138
    %1142 = vmatprep.subr.mxu0 0.0
    %1143 = vmatpush1.xpose.msra.mxu0 0.0
    %1144 = vmatprep.subr.mxu0 0.0
    %1145 = vmatpush1.xpose.msra.mxu0 0.0
    %1146 = vmatprep.subr.mxu0 0.0
    %1147 = vmatpush1.xpose.msra.mxu0 0.0
    %1148 = vmatprep.subr.mxu0 0.0
    %1149 = vmatpush1.xpose.msra.mxu0 0.0
    %1150 = vmatprep.subr.mxu0 0.0
    %1151 = vmatpush1.xpose.msra.mxu0 0.0
    %1152 = vmatprep.subr.mxu0 0.0
    %1153 = vmatpush1.xpose.msra.mxu0 0.0
    %1154 = vmatprep.subr.mxu0 0.0
    %1155 = vmatpush1.xpose.msra.mxu0 0.0
    %1156 = vmatprep.subr.mxu0 0.0
    %1157 = vmatpush1.xpose.msra.mxu0 0.0
    %1158 = vmatprep.subr.mxu0 0.0
    %1159 = vmatpush1.xpose.msra.mxu0 0.0
    %1160 = vmatprep.subr.mxu0 0.0
    %1161 = vmatpush1.xpose.msra.mxu0 0.0
    %1162 = vmatprep.subr.mxu0 0.0
    %1163 = vmatpush1.xpose.msra.mxu0 0.0
    %1164 = vmatprep.subr.mxu0 0.0
    %1165 = vmatpush1.xpose.msra.mxu0 0.0
    %1166 = vmatprep.subr.mxu0 0.0
    %1167 = vmatpush1.xpose.msra.mxu0 0.0
    %1168 = vmatprep.subr.mxu0 0.0
    %1169 = vmatpush1.xpose.msra.mxu0 0.0
    %1170 = vmatprep.subr.mxu0 0.0
    %1171 = vmatpush1.xpose.msra.mxu0 0.0
    %1172 = vmatprep.subr.mxu0 0.0
    %1173 = vmatpush1.xpose.msra.mxu0 0.0
    %1174 = vmatprep.subr.mxu0 0.0
    %1175 = vmatpush1.xpose.msra.mxu0 0.0
    %1176 = vmatprep.subr.mxu0 0.0
    %1177 = vmatpush1.xpose.msra.mxu0 0.0
    %1178 = vmatprep.subr.mxu0 0.0
    %1179 = vmatpush1.xpose.msra.mxu0 0.0
    %1180 = vmatprep.subr.mxu0 0.0
    %1181 = vmatpush1.xpose.msra.mxu0 0.0
    %1182 = vmatprep.subr.mxu0 0.0
    %1183 = vmatpush1.xpose.msra.mxu0 0.0
    %1184 = vmatprep.subr.mxu0 0.0
    %1185 = vmatpush1.xpose.msra.mxu0 0.0
    %1186 = vmatprep.subr.mxu0 0.0
    %1187 = vmatpush1.xpose.msra.mxu0 0.0
    %1188 = vmatprep.subr.mxu0 0.0
    %1189 = vmatpush1.xpose.msra.mxu0 0.0
    %1190 = vmatprep.subr.mxu0 0.0
    %1191 = vmatpush1.xpose.msra.mxu0 0.0
    %1192 = vmatprep.subr.mxu0 0.0
    %1193 = vmatpush1.xpose.msra.mxu0 0.0
    %1194 = vmatprep.subr.mxu0 0.0
    %1195 = vmatpush1.xpose.msra.mxu0 0.0
    %1196 = vmatprep.subr.mxu0 0.0
    %1197 = vmatpush1.xpose.msra.mxu0 0.0
    %1198 = vmatprep.subr.mxu0 0.0
    %1199 = vmatpush1.xpose.msra.mxu0 0.0
    %1200 = vmatprep.subr.mxu0 0.0
    %1201 = vmatpush1.xpose.msra.mxu0 0.0
    %1202 = vmatprep.subr.mxu0 0.0
    %1203 = vmatpush1.xpose.msra.mxu0 0.0
    %1204 = vmatprep.mubr.f32.mxu0 0.0
    %1205 = vmatmul.mubr.f32.gmra.mrb[0].mxu0 %v1136
    %v1206 = vpop.f32.mrb[0].mxu0
    %v1207 = vadd.f32 %v142, %v1206
    %v1208 = vpop.f32.mrb[0].mxu0
    %1209 = vdwg.mxu0
    %v1210 = vsel %vm146, %v1207, -inf
    %1211 = vmax.xlane.f32.xlu0 %v1210
    %v1212 = vpop.xlane.xlu0 %1211
    %v1213 = vsub.f32 %v1207, %v1212
    %v1214 = vmul.f32 %v1213, 1.442695
    %v1215 = vpow.pop %v1214
    %v1216 = vsel %vm146, %v1215, 0.0
    %1217 = vadd.xlane.f32.xlu0 %v1216
    %v1218 = vpop.xlane.xlu0 %1217
    %1219 = vrot.lane.b32.xlu0 %v106, 72
    %v1220 = vpop.permute.xlu0 %1219
    %v1223 = vsel %vm146, %v1215, 0
    %1225 = vmatprep.subr.mxu0 0.0
    %1226 = vmatpush1.msra.mxu0 %v1220
    %1227 = vmatprep.subr.mxu0 0.0
    %1228 = vmatpush1.msra.mxu0 0.0
    %1229 = vmatprep.subr.mxu0 0.0
    %1230 = vmatpush1.msra.mxu0 0.0
    %1231 = vmatprep.subr.mxu0 0.0
    %1232 = vmatpush1.msra.mxu0 0.0
    %1233 = vmatprep.subr.mxu0 0.0
    %1234 = vmatpush1.msra.mxu0 0.0
    %1235 = vmatprep.subr.mxu0 0.0
    %1236 = vmatpush1.msra.mxu0 0.0
    %1237 = vmatprep.subr.mxu0 0.0
    %1238 = vmatpush1.msra.mxu0 0.0
    %1239 = vmatprep.subr.mxu0 0.0
    %1240 = vmatpush1.msra.mxu0 0.0
    %1241 = vmatprep.subr.mxu0 0.0
    %1242 = vmatpush1.msra.mxu0 0.0
    %1243 = vmatprep.subr.mxu0 0.0
    %1244 = vmatpush1.msra.mxu0 0.0
    %1245 = vmatprep.subr.mxu0 0.0
    %1246 = vmatpush1.msra.mxu0 0.0
    %1247 = vmatprep.subr.mxu0 0.0
    %1248 = vmatpush1.msra.mxu0 0.0
    %1249 = vmatprep.subr.mxu0 0.0
    %1250 = vmatpush1.msra.mxu0 0.0
    %1251 = vmatprep.subr.mxu0 0.0
    %1252 = vmatpush1.msra.mxu0 0.0
    %1253 = vmatprep.subr.mxu0 0.0
    %1254 = vmatpush1.msra.mxu0 0.0
    %1255 = vmatprep.subr.mxu0 0.0
    %1256 = vmatpush1.msra.mxu0 0.0
    %1257 = vmatprep.subr.mxu0 0.0
    %1258 = vmatpush1.msra.mxu0 0.0
    %1259 = vmatprep.subr.mxu0 0.0
    %1260 = vmatpush1.msra.mxu0 0.0
    %1261 = vmatprep.subr.mxu0 0.0
    %1262 = vmatpush1.msra.mxu0 0.0
    %1263 = vmatprep.subr.mxu0 0.0
    %1264 = vmatpush1.msra.mxu0 0.0
    %1265 = vmatprep.subr.mxu0 0.0
    %1266 = vmatpush1.msra.mxu0 0.0
    %1267 = vmatprep.subr.mxu0 0.0
    %1268 = vmatpush1.msra.mxu0 0.0
    %1269 = vmatprep.subr.mxu0 0.0
    %1270 = vmatpush1.msra.mxu0 0.0
    %1271 = vmatprep.subr.mxu0 0.0
    %1272 = vmatpush1.msra.mxu0 0.0
    %1273 = vmatprep.subr.mxu0 0.0
    %1274 = vmatpush1.msra.mxu0 0.0
    %1275 = vmatprep.subr.mxu0 0.0
    %1276 = vmatpush1.msra.mxu0 0.0
    %1277 = vmatprep.subr.mxu0 0.0
    %1278 = vmatpush1.msra.mxu0 0.0
    %1279 = vmatprep.subr.mxu0 0.0
    %1280 = vmatpush1.msra.mxu0 0.0
    %1281 = vmatprep.subr.mxu0 0.0
    %1282 = vmatpush1.msra.mxu0 0.0
    %1283 = vmatprep.subr.mxu0 0.0
    %1284 = vmatpush1.msra.mxu0 0.0
    %1285 = vmatprep.subr.mxu0 0.0
    %1286 = vmatpush1.msra.mxu0 0.0
    %1287 = vmatprep.subr.mxu0 0.0
    %1288 = vmatpush1.msra.mxu0 0.0
    %1289 = vmatprep.mubr.f32.mxu0 0.0
    %1290 = vmatmul.mubr.f32.gmra.mrb[0].mxu0 %v1223
    %v1291 = vpop.f32.mrb[0].mxu0
    %v1292 = vadd.f32 0.0, %v1291
    %v1293 = vpop.f32.mrb[0].mxu0
    %1294 = vdwg.mxu0
    %v1295 = vrcp.pop %v1218
    %v1296 = vmul.f32 %v1292, %v1295
    %1297 = vrot.lane.b32.xlu0 %v136, 104
    %v1298 = vpop.permute.xlu0 %1297
    %v1299 = vsel %vm146, %v1298, 0
    %1301 = vmatprep.subr.mxu0 0.0
    %1302 = vmatpush1.xpose.msra.mxu0 %v1138
    %1303 = vmatprep.subr.mxu0 0.0
    %1304 = vmatpush1.xpose.msra.mxu0 0.0
    %1305 = vmatprep.subr.mxu0 0.0
    %1306 = vmatpush1.xpose.msra.mxu0 0.0
    %1307 = vmatprep.subr.mxu0 0.0
    %1308 = vmatpush1.xpose.msra.mxu0 0.0
    %1309 = vmatprep.subr.mxu0 0.0
    %1310 = vmatpush1.xpose.msra.mxu0 0.0
    %1311 = vmatprep.subr.mxu0 0.0
    %1312 = vmatpush1.xpose.msra.mxu0 0.0
    %1313 = vmatprep.subr.mxu0 0.0
    %1314 = vmatpush1.xpose.msra.mxu0 0.0
    %1315 = vmatprep.subr.mxu0 0.0
    %1316 = vmatpush1.xpose.msra.mxu0 0.0
    %1317 = vmatprep.subr.mxu0 0.0
    %1318 = vmatpush1.xpose.msra.mxu0 0.0
    %1319 = vmatprep.subr.mxu0 0.0
    %1320 = vmatpush1.xpose.msra.mxu0 0.0
    %1321 = vmatprep.subr.mxu0 0.0
    %1322 = vmatpush1.xpose.msra.mxu0 0.0
    %1323 = vmatprep.subr.mxu0 0.0
    %1324 = vmatpush1.xpose.msra.mxu0 0.0
    %1325 = vmatprep.subr.mxu0 0.0
    %1326 = vmatpush1.xpose.msra.mxu0 0.0
    %1327 = vmatprep.subr.mxu0 0.0
    %1328 = vmatpush1.xpose.msra.mxu0 0.0
    %1329 = vmatprep.subr.mxu0 0.0
    %1330 = vmatpush1.xpose.msra.mxu0 0.0
    %1331 = vmatprep.subr.mxu0 0.0
    %1332 = vmatpush1.xpose.msra.mxu0 0.0
    %1333 = vmatprep.subr.mxu0 0.0
    %1334 = vmatpush1.xpose.msra.mxu0 0.0
    %1335 = vmatprep.subr.mxu0 0.0
    %1336 = vmatpush1.xpose.msra.mxu0 0.0
    %1337 = vmatprep.subr.mxu0 0.0
    %1338 = vmatpush1.xpose.msra.mxu0 0.0
    %1339 = vmatprep.subr.mxu0 0.0
    %1340 = vmatpush1.xpose.msra.mxu0 0.0
    %1341 = vmatprep.subr.mxu0 0.0
    %1342 = vmatpush1.xpose.msra.mxu0 0.0
    %1343 = vmatprep.subr.mxu0 0.0
    %1344 = vmatpush1.xpose.msra.mxu0 0.0
    %1345 = vmatprep.subr.mxu0 0.0
    %1346 = vmatpush1.xpose.msra.mxu0 0.0
    %1347 = vmatprep.subr.mxu0 0.0
    %1348 = vmatpush1.xpose.msra.mxu0 0.0
    %1349 = vmatprep.subr.mxu0 0.0
    %1350 = vmatpush1.xpose.msra.mxu0 0.0
    %1351 = vmatprep.subr.mxu0 0.0
    %1352 = vmatpush1.xpose.msra.mxu0 0.0
    %1353 = vmatprep.subr.mxu0 0.0
    %1354 = vmatpush1.xpose.msra.mxu0 0.0
    %1355 = vmatprep.subr.mxu0 0.0
    %1356 = vmatpush1.xpose.msra.mxu0 0.0
    %1357 = vmatprep.subr.mxu0 0.0
    %1358 = vmatpush1.xpose.msra.mxu0 0.0
    %1359 = vmatprep.subr.mxu0 0.0
    %1360 = vmatpush1.xpose.msra.mxu0 0.0
    %1361 = vmatprep.subr.mxu0 0.0
    %1362 = vmatpush1.xpose.msra.mxu0 0.0
    %1363 = vmatprep.subr.mxu0 0.0
    %1364 = vmatpush1.xpose.msra.mxu0 0.0
    %1365 = vmatprep.mubr.f32.mxu0 0.0
    %1366 = vmatmul.mubr.f32.gmra.mrb[0].mxu0 %v1299
    %v1367 = vpop.f32.mrb[0].mxu0
    %v1368 = vadd.f32 %v142, %v1367
    %v1369 = vpop.f32.mrb[0].mxu0
    %1370 = vdwg.mxu0
    %v1371 = vsel %vm146, %v1368, -inf
    %1372 = vmax.xlane.f32.xlu0 %v1371
    %v1373 = vpop.xlane.xlu0 %1372
    %v1374 = vsub.f32 %v1368, %v1373
    %v1375 = vmul.f32 %v1374, 1.442695
    %v1376 = vpow.pop %v1375
    %v1377 = vsel %vm146, %v1376, 0.0
    %1378 = vadd.xlane.f32.xlu0 %v1377
    %v1379 = vpop.xlane.xlu0 %1378
    %v1381 = vsel %vm146, %v1376, 0
    %1383 = vmatprep.subr.mxu0 0.0
    %1384 = vmatpush1.msra.mxu0 %v1220
    %1385 = vmatprep.subr.mxu0 0.0
    %1386 = vmatpush1.msra.mxu0 0.0
    %1387 = vmatprep.subr.mxu0 0.0
    %1388 = vmatpush1.msra.mxu0 0.0
    %1389 = vmatprep.subr.mxu0 0.0
    %1390 = vmatpush1.msra.mxu0 0.0
    %1391 = vmatprep.subr.mxu0 0.0
    %1392 = vmatpush1.msra.mxu0 0.0
    %1393 = vmatprep.subr.mxu0 0.0
    %1394 = vmatpush1.msra.mxu0 0.0
    %1395 = vmatprep.subr.mxu0 0.0
    %1396 = vmatpush1.msra.mxu0 0.0
    %1397 = vmatprep.subr.mxu0 0.0
    %1398 = vmatpush1.msra.mxu0 0.0
    %1399 = vmatprep.subr.mxu0 0.0
    %1400 = vmatpush1.msra.mxu0 0.0
    %1401 = vmatprep.subr.mxu0 0.0
    %1402 = vmatpush1.msra.mxu0 0.0
    %1403 = vmatprep.subr.mxu0 0.0
    %1404 = vmatpush1.msra.mxu0 0.0
    %1405 = vmatprep.subr.mxu0 0.0
    %1406 = vmatpush1.msra.mxu0 0.0
    %1407 = vmatprep.subr.mxu0 0.0
    %1408 = vmatpush1.msra.mxu0 0.0
    %1409 = vmatprep.subr.mxu0 0.0
    %1410 = vmatpush1.msra.mxu0 0.0
    %1411 = vmatprep.subr.mxu0 0.0
    %1412 = vmatpush1.msra.mxu0 0.0
    %1413 = vmatprep.subr.mxu0 0.0
    %1414 = vmatpush1.msra.mxu0 0.0
    %1415 = vmatprep.subr.mxu0 0.0
    %1416 = vmatpush1.msra.mxu0 0.0
    %1417 = vmatprep.subr.mxu0 0.0
    %1418 = vmatpush1.msra.mxu0 0.0
    %1419 = vmatprep.subr.mxu0 0.0
    %1420 = vmatpush1.msra.mxu0 0.0
    %1421 = vmatprep.subr.mxu0 0.0
    %1422 = vmatpush1.msra.mxu0 0.0
    %1423 = vmatprep.subr.mxu0 0.0
    %1424 = vmatpush1.msra.mxu0 0.0
    %1425 = vmatprep.subr.mxu0 0.0
    %1426 = vmatpush1.msra.mxu0 0.0
    %1427 = vmatprep.subr.mxu0 0.0
    %1428 = vmatpush1.msra.mxu0 0.0
    %1429 = vmatprep.subr.mxu0 0.0
    %1430 = vmatpush1.msra.mxu0 0.0
    %1431 = vmatprep.subr.mxu0 0.0
    %1432 = vmatpush1.msra.mxu0 0.0
    %1433 = vmatprep.subr.mxu0 0.0
    %1434 = vmatpush1.msra.mxu0 0.0
    %1435 = vmatprep.subr.mxu0 0.0
    %1436 = vmatpush1.msra.mxu0 0.0
    %1437 = vmatprep.subr.mxu0 0.0
    %1438 = vmatpush1.msra.mxu0 0.0
    %1439 = vmatprep.subr.mxu0 0.0
    %1440 = vmatpush1.msra.mxu0 0.0
    %1441 = vmatprep.subr.mxu0 0.0
    %1442 = vmatpush1.msra.mxu0 0.0
    %1443 = vmatprep.subr.mxu0 0.0
    %1444 = vmatpush1.msra.mxu0 0.0
    %1445 = vmatprep.subr.mxu0 0.0
    %1446 = vmatpush1.msra.mxu0 0.0
    %1447 = vmatprep.mubr.f32.mxu0 0.0
    %1448 = vmatmul.mubr.f32.gmra.mrb[0].mxu0 %v1381
    %v1449 = vpop.f32.mrb[0].mxu0
    %v1450 = vadd.f32 0.0, %v1449
    %v1451 = vpop.f32.mrb[0].mxu0
    %1452 = vdwg.mxu0
    %v1453 = vrcp.pop %v1379
    %v1454 = vmul.f32 %v1450, %v1453
    %1456 = vrot.lane.b32.xlu0 %v1131, 8
    %v1457 = vpop.permute.xlu0 %1456
    %1460 = vrot.lane.b32.xlu0 %v1296, 16
    %v1461 = vpop.permute.xlu0 %1460
    %1464 = vrot.lane.b32.xlu0 %v1454, 24
    %v1465 = vpop.permute.xlu0 %1464
    %v1467 = vsel %vm146, %v973, %v1457
    %v1468 = vsel %vm804, %v1467, %v1461
    %v1469 = vsel %vm806, %v1468, %v1465
    %v1470 = vld [vmem:[%s2] sm:$0xff]
    %v1471 = vld [vmem:[%s2 + $0x8] sm:$0xff]
    %v1472 = vld [vmem:[%s2 + $0x10] sm:$0xff]
    %v1473 = vld [vmem:[%s2 + $0x18] sm:$0xff]
    %v1475 = vsel %vm27, %v807, 0
    %v1478 = vsel %vm27, %v1469, 0
    %1480 = vmatprep.subr.mxu0 0.0
    %1481 = vmatpush1.msra.mxu0 %v1470
    %1482 = vmatprep.subr.mxu0 0.0
    %1483 = vmatpush1.msra.mxu0 %v1471
    %1484 = vmatprep.subr.mxu0 0.0
    %1485 = vmatpush1.msra.mxu0 %v1472
    %1486 = vmatprep.subr.mxu0 0.0
    %1487 = vmatpush1.msra.mxu0 %v1473
    %1488 = vmatprep.subr.mxu0 0.0
    %1489 = vmatpush1.msra.mxu0 0.0
    %1490 = vmatprep.subr.mxu0 0.0
    %1491 = vmatpush1.msra.mxu0 0.0
    %1492 = vmatprep.subr.mxu0 0.0
    %1493 = vmatpush1.msra.mxu0 0.0
    %1494 = vmatprep.subr.mxu0 0.0
    %1495 = vmatpush1.msra.mxu0 0.0
    %1496 = vmatprep.subr.mxu0 0.0
    %1497 = vmatpush1.msra.mxu0 0.0
    %1498 = vmatprep.subr.mxu0 0.0
    %1499 = vmatpush1.msra.mxu0 0.0
    %1500 = vmatprep.subr.mxu0 0.0
    %1501 = vmatpush1.msra.mxu0 0.0
    %1502 = vmatprep.subr.mxu0 0.0
    %1503 = vmatpush1.msra.mxu0 0.0
    %1504 = vmatprep.subr.mxu0 0.0
    %1505 = vmatpush1.msra.mxu0 0.0
    %1506 = vmatprep.subr.mxu0 0.0
    %1507 = vmatpush1.msra.mxu0 0.0
    %1508 = vmatprep.subr.mxu0 0.0
    %1509 = vmatpush1.msra.mxu0 0.0
    %1510 = vmatprep.subr.mxu0 0.0
    %1511 = vmatpush1.msra.mxu0 0.0
    %1512 = vmatprep.subr.mxu0 0.0
    %1513 = vmatpush1.msra.mxu0 0.0
    %1514 = vmatprep.subr.mxu0 0.0
    %1515 = vmatpush1.msra.mxu0 0.0
    %1516 = vmatprep.subr.mxu0 0.0
    %1517 = vmatpush1.msra.mxu0 0.0
    %1518 = vmatprep.subr.mxu0 0.0
    %1519 = vmatpush1.msra.mxu0 0.0
    %1520 = vmatprep.subr.mxu0 0.0
    %1521 = vmatpush1.msra.mxu0 0.0
    %1522 = vmatprep.subr.mxu0 0.0
    %1523 = vmatpush1.msra.mxu0 0.0
    %1524 = vmatprep.subr.mxu0 0.0
    %1525 = vmatpush1.msra.mxu0 0.0
    %1526 = vmatprep.subr.mxu0 0.0
    %1527 = vmatpush1.msra.mxu0 0.0
    %1528 = vmatprep.subr.mxu0 0.0
    %1529 = vmatpush1.msra.mxu0 0.0
    %1530 = vmatprep.subr.mxu0 0.0
    %1531 = vmatpush1.msra.mxu0 0.0
    %1532 = vmatprep.subr.mxu0 0.0
    %1533 = vmatpush1.msra.mxu0 0.0
    %1534 = vmatprep.subr.mxu0 0.0
    %1535 = vmatpush1.msra.mxu0 0.0
    %1536 = vmatprep.subr.mxu0 0.0
    %1537 = vmatpush1.msra.mxu0 0.0
    %1538 = vmatprep.subr.mxu0 0.0
    %1539 = vmatpush1.msra.mxu0 0.0
    %1540 = vmatprep.subr.mxu0 0.0
    %1541 = vmatpush1.msra.mxu0 0.0
    %1542 = vmatprep.subr.mxu0 0.0
    %1543 = vmatpush1.msra.mxu0 0.0
    %1544 = vmatprep.mubr.f32.mxu0 0.0
    %1545 = vmatmul.mubr.f32.gmra.mrb[0].mxu0 %v1475
    %v1546 = vpop.f32.mrb[0].mxu0
    %v1547 = vadd.f32 0.0, %v1546
    %v1548 = vpop.f32.mrb[0].mxu0
    %1549 = vmatprep.mubr.f32.mxu0 0.0
    %1550 = vmatmul.mubr.f32.gmra.mrb[0].mxu0 %v1478
    %v1551 = vpop.f32.mrb[0].mxu0
    %v1552 = vadd.f32 0.0, %v1551
    %v1553 = vpop.f32.mrb[0].mxu0
    %1554 = vdwg.mxu0
    %1555 = vst.msk [vmem:[#allocation2] sm:$0xff] %vm27, %v1547
    %1556 = vst.msk [vmem:[#allocation2 + $0x8] sm:$0xff] %vm27, %v1552
    // Predicated region
    $region22: #{attention_forward.1} parent=1 // pred_check
      _
    $region23: #{attention_forward.1} parent=1 // pred_check_branch
      %1558 = sbr.rel (0) target = $region25
    $region24: #{attention_forward.1} parent=1 // pred_region
      %s1560 = ssub.s32 256, 256
      %1561 = vsyncadd [#allocation3], %s1560
      %s1562 = sshll.u32 [#allocation2], 4
      %s1563 = int_to_ptr.vmem [resolvable:$true] %s1562
      %1568 = dma.vmem_to_hbm [thread:$0]  %s1563, 256, %s5, [#allocation3], 128, 128, 8
    $region25: #{attention_forward.1} parent=1 // pred_fallthru
      _
    // Predicated region
    $region26: #{attention_forward.1} parent=1 // pred_check
      _
    $region27: #{attention_forward.1} parent=1 // pred_check_branch
      %1570 = sbr.rel (0) target = $region29
    $region28: #{attention_forward.1} parent=1 // pred_region
      %1571 = dma.done [#allocation3], 256
    $region29: #{attention_forward.1} parent=1 // pred_fallthru
      _
    %1572 = vsyncpa [#allocation3], 1

</llo_original>
